<compile_context>
chip_gen: v5e
topology: v5e:2x2
jax: 0.10.0
libtpu: 0.0.40
codegen_flags: <defaults>
</compile_context>

<pallas_src>
import math

import numpy as np

import jax
import jax.numpy as jnp
from jax.experimental import pallas as pl
from jax.experimental.pallas import tpu as pltpu


# ---------------------------------------------------------------------------
# Static model / layout constants
# ---------------------------------------------------------------------------
H1, W1, C1, F1 = 16, 16, 1, 4    # conv1: 16x16x1 -> 16x16x4, pool -> 8x8x4
H2, W2, C2, F2 = 8, 8, 4, 8      # conv2:  8x8x4  ->  8x8x8, pool -> 4x4x8
L1 = (W1 // 2) * F1              # 32 lanes after conv1+pool (lane = x*4 + c)
L2 = (W2 // 2) * F2              # 32 lanes after conv2+pool (lane = x*8 + c)
NROWS_IN = 18                    # row-blocks per tile in the prepared input
NROWS_S2 = 9                     # row-blocks in the stage-2 scratch
OUT_PAD = 128                    # lane-dense padded logits width
TB_MAX = 256                     # sweepable; 128-256 is the sweet spot

# Prepared-input row-block layout (per tile; each block is TB image rows):
#   blocks  0- 3 : image rows y ≡ 0 (mod 4)  -> rows 0,4,8,12
#   block   4    : zero padding row
#   blocks  5- 8 : y ≡ 1                     -> rows 1,5,9,13
#   blocks  9-12 : y ≡ 2                     -> rows 2,6,10,14
#   block  13    : zero padding row
#   blocks 14-17 : y ≡ 3                     -> rows 3,7,11,15
ROW_SRC = [0, 4, 8, 12, -1, 1, 5, 9, 13, 2, 6, 10, 14, -1, 3, 7, 11, 15]

# conv1: output rows y=4t+q read input rows y-1, y, y+1 -> 3 contiguous
# 4-block slices of the prepared input, per q.
S1 = ((13, 0, 5), (0, 5, 9), (5, 9, 14), (9, 14, 1))
# conv2: output rows y=2u+r read stage-2 scratch rows y-1, y, y+1; scratch
# layout is [even pooled rows (4 blocks), Z, odd pooled rows (4 blocks)].
S2 = ((4, 0, 5), (0, 5, 1))


# ---------------------------------------------------------------------------
# Fused forward kernel: conv1+relu+pool -> conv2+relu+pool -> fc1+relu -> fc2
# ---------------------------------------------------------------------------
def make_fused_kernel(tb):
    def kernel(x_ref, a1_ref, b1_ref, a2_ref, b2_ref,
               w1_ref, fb1_ref, w2_ref, fb2_ref, o_ref, s2_ref):
        def mm(x_bf16, w_bf16):
            # bf16 operands into the MXU, f32 accumulation.
            return jnp.dot(x_bf16, w_bf16, preferred_element_type=jnp.float32)

        def rows(ref, start):
            return ref[start * tb:(start + 4) * tb, :]

        # ---- stage 1: conv1 (3x3, pad 1) + 2x2 maxpool (+bias, ReLU) -------
        def conv1_group(q):        # conv output rows y = 4t+q, t = 0..3
            a, b, c = S1[q]
            out = mm(rows(x_ref, a), a1_ref[0])
            out = out + mm(rows(x_ref, b), a1_ref[1])
            out = out + mm(rows(x_ref, c), a1_ref[2])
            # parity-packed N: cols [0:L1] = even output cols, [L1:] = odd.
            return jnp.maximum(out[:, :L1], out[:, L1:])     # (4*tb, L1)

        pool1_even = jnp.maximum(conv1_group(0), conv1_group(1))  # pooled rows 0,2,4,6
        pool1_odd = jnp.maximum(conv1_group(2), conv1_group(3))   # pooled rows 1,3,5,7
        # per-channel bias is constant inside each pooling window and ReLU is
        # monotone, so bias+ReLU commute with the max (f32 math on the VPU).
        h1_even = jnp.maximum(pool1_even + b1_ref[...], 0.0)
        h1_odd = jnp.maximum(pool1_odd + b1_ref[...], 0.0)

        # ---- stage-2 scratch (bf16): [even(4), Z, odd(4)] row-blocks --------
        # NOTE: the zero block is re-written every step; gating it on
        # program_id==0 would break under megacore grid sharding (v7x).
        s2_ref[0:4 * tb, :] = h1_even.astype(jnp.bfloat16)
        s2_ref[4 * tb:5 * tb, :] = jnp.zeros((tb, L1), jnp.bfloat16)
        s2_ref[5 * tb:9 * tb, :] = h1_odd.astype(jnp.bfloat16)

        # ---- stage 2: conv2 (3x3, pad 1) + 2x2 maxpool (+bias, ReLU) -------
        def conv2_group(r):        # conv output rows y = 2u+r, u = 0..3
            a, b, c = S2[r]
            out = mm(rows(s2_ref, a), a2_ref[0])
            out = out + mm(rows(s2_ref, b), a2_ref[1])
            out = out + mm(rows(s2_ref, c), a2_ref[2])
            return jnp.maximum(out[:, :L2], out[:, L2:])      # (4*tb, L2)

        pool2 = jnp.maximum(conv2_group(0), conv2_group(1))
        h2 = jnp.maximum(pool2 + b2_ref[...], 0.0)            # (4*tb, L2)
        h2b = h2.astype(jnp.bfloat16)                          # cast once, used 4x

        # ---- fc1 (+ReLU): NCHW flatten order absorbed into the pre-permuted
        # weight; 4 row-block matmuls, no transpose/reshape in-kernel.
        acc = mm(h2b[0:tb, :], w1_ref[0:L2, :])
        for u in range(1, 4):
            acc = acc + mm(h2b[u * tb:(u + 1) * tb, :],
                           w1_ref[u * L2:(u + 1) * L2, :])
        hf = jnp.maximum(acc + fb1_ref[...], 0.0)              # (tb, 32)

        # ---- fc2 -> lane-dense padded logits (cols 10..127 are zero) --------
        o_ref[...] = mm(hf.astype(jnp.bfloat16), w2_ref[...]) + fb2_ref[...]

    return kernel


# ---------------------------------------------------------------------------
# Host-side (one-time) weight preprocessing
# ---------------------------------------------------------------------------
def build_conv_mats(w_oihw, w_in):
    """Fold a 3x3 stride-1 pad-1 conv along width plus the horizontal half of
    the 2x2 pool into 3 dense matmul weights (one per kernel row kh).

    Returns (3, w_in*Cin, 2*(w_in//2)*Cout). Rows: xi*Cin + ci.  Columns are
    parity-packed: [0 : half) = even output columns, [half : 2*half) = odd,
    each ordered xo*Cout + co, so max(out[:, :half], out[:, half:]) is the
    horizontal pool.
    """
    w = np.asarray(w_oihw, np.float32)
    cout, cin, nkh, nkw = w.shape
    w_out = w_in // 2
    s = np.arange(2)[:, None, None, None]
    kw = np.arange(nkw)[None, :, None, None]
    xi = np.arange(w_in)[None, None, :, None]
    xo = np.arange(w_out)[None, None, None, :]
    sel = (xi == 2 * xo + s + kw - 1).astype(np.float32)   # (2, 3, w_in, w_out)
    a = np.einsum("skxy,oihk->hxisyo", sel, w)             # kh, xi, ci, s, xo, co
    return jnp.asarray(a.reshape(nkh, w_in * cin, 2 * w_out * cout))


def prepare_kernel_params(params):
    """Precompute all matmul-ready, kernel-layout weights once (not per call)."""
    A1 = build_conv_mats(params["conv1_w"], W1).astype(jnp.bfloat16)   # (3,16,64)
    A2 = build_conv_mats(params["conv2_w"], W2).astype(jnp.bfloat16)   # (3,32,64)
    b1t = jnp.tile(params["conv1_b"].astype(jnp.float32), W1 // 2).reshape(1, L1)
    b2t = jnp.tile(params["conv2_b"].astype(jnp.float32), W2 // 2).reshape(1, L2)

    # torch.nn.Flatten order of the 8x4x4 map is c*16 + y*4 + x; the kernel's
    # feature layout is row-block y, lane x*8 + c -> permute fc1 weight rows.
    perm = [c * 16 + u * 4 + x
            for u in range(4) for x in range(4) for c in range(8)]
    W1blk = params["fc1_w"].T[jnp.array(perm), :].astype(jnp.bfloat16)  # (128,32)
    fb1 = params["fc1_b"].reshape(1, 32).astype(jnp.float32)

    # Lane-dense output: pad fc2 to 128 output columns (cols 10..127 zero).
    W2pad = jnp.zeros((32, OUT_PAD), jnp.float32)
    W2pad = W2pad.at[:, :10].set(params["fc2_w"].T).astype(jnp.bfloat16)
    fb2pad = jnp.zeros((1, OUT_PAD), jnp.float32).at[0, :10].set(params["fc2_b"])
    return dict(A1=A1, b1t=b1t, A2=A2, b2t=b2t,
                W1blk=W1blk, fb1=fb1, W2=W2pad, fb2=fb2pad)


def pick_tile(n):
    """Batch tile: multiple of 16 (bf16 sublane packing), capped at TB_MAX,
    and <= ceil(n/2) so the grid has >= 2 steps whenever the batch allows it
    (v7x: both TensorCores get work)."""
    tb = ((-(-n // 2)) + 15) // 16 * 16
    return int(max(16, min(TB_MAX, tb)))


def prep_input(x_nchw, tb, g):
    """NCHW input -> bf16 per-tile row-parity-split layout (g*18*tb, 16).
    Pure layout plumbing (gather + transpose), done once per forward in bf16
    to halve prep HBM traffic."""
    n = x_nchw.shape[0]
    x = x_nchw[:, 0, :, :].astype(jnp.bfloat16)              # (n, 16, 16)
    n_pad = g * tb
    # pad batch to a tile multiple; append one zero image row used as the
    # conv "same"-padding source for the Z blocks.
    x = jnp.pad(x, ((0, n_pad - n), (0, 1), (0, 0)))         # (n_pad, 17, 16)
    src = jnp.array([r if r >= 0 else H1 for r in ROW_SRC], jnp.int32)
    xg = x.reshape(g, tb, H1 + 1, W1)
    xsel = xg[:, :, src, :]                                   # (g, tb, 18, 16)
    return jnp.transpose(xsel, (0, 2, 1, 3)).reshape(g * NROWS_IN * tb, W1)


# ---------------------------------------------------------------------------
# Forward pass (== TorchCNN.forward with the concretized nn_stack)
# ---------------------------------------------------------------------------
@jax.jit
def forward(kparams, x_nchw):
    n = x_nchw.shape[0]
    assert x_nchw.shape[1:] == (1, H1, W1)
    tb = pick_tile(n)
    g = -(-n // tb)
    xprep = prep_input(x_nchw, tb, g)

    def const_spec(arr):
        nd = arr.ndim
        return pl.BlockSpec(arr.shape, lambda i, _nd=nd: (0,) * _nd)

    out = pl.pallas_call(
        make_fused_kernel(tb),
        out_shape=jax.ShapeDtypeStruct((g * tb, OUT_PAD), jnp.float32),
        grid_spec=pltpu.PrefetchScalarGridSpec(
            num_scalar_prefetch=0,
            grid=(g,),
            in_specs=[
                pl.BlockSpec((NROWS_IN * tb, W1 * C1), lambda i: (i, 0)),
                const_spec(kparams["A1"]),
                const_spec(kparams["b1t"]),
                const_spec(kparams["A2"]),
                const_spec(kparams["b2t"]),
                const_spec(kparams["W1blk"]),
                const_spec(kparams["fb1"]),
                const_spec(kparams["W2"]),
                const_spec(kparams["fb2"]),
            ],
            out_specs=pl.BlockSpec((tb, OUT_PAD), lambda i: (i, 0)),
            scratch_shapes=[pltpu.VMEM((NROWS_S2 * tb, L1), jnp.bfloat16)],
        ),
        compiler_params=pltpu.CompilerParams(
            dimension_semantics=("parallel",),   # v7x: shard tiles across 2 TCs
            # Per-step footprint at TB=256 is < 2 MiB; 32 MiB limit fits
            # v7x's 64 MiB physical VMEM and v5e/v6e's 128 MiB with margin.
            vmem_limit_bytes=32 * 1024 * 1024,
        ),
    )(xprep, kparams["A1"], kparams["b1t"], kparams["A2"], kparams["b2t"],
      kparams["W1blk"], kparams["fb1"], kparams["W2"], kparams["fb2"])
    return out[:n, :10]


# ---------------------------------------------------------------------------
# Parameter init (deterministic, PyTorch-default-style uniform(-1/sqrt(fan_in)))
# ---------------------------------------------------------------------------
def init_params(key):
    def u(k, shape, fan_in):
        bound = 1.0 / math.sqrt(fan_in)
        return jax.random.uniform(k, shape, jnp.float32, -bound, bound)

    ks = jax.random.split(key, 8)
    return {
        "conv1_w": u(ks[0], (F1, C1, 3, 3), C1 * 9),
        "conv1_b": u(ks[1], (F1,), C1 * 9),
        "conv2_w": u(ks[2], (F2, C2, 3, 3), C2 * 9),
        "conv2_b": u(ks[3], (F2,), C2 * 9),
        "fc1_w": u(ks[4], (32, 128), 128),   # torch Linear layout (out, in)
        "fc1_b": u(ks[5], (32,), 128),
        "fc2_w": u(ks[6], (10, 32), 32),
        "fc2_b": u(ks[7], (32,), 32)[:10] if False else u(ks[7], (10,), 32),
    }


# ---------------------------------------------------------------------------
# Plain-JAX reference with bf16-quantized weights/inputs (f32 math), so the
# comparison uses a tight per-element relative tolerance instead of a loose
# absolute one.
# ---------------------------------------------------------------------------
def _q(a):
    return jnp.asarray(a, jnp.float32).astype(jnp.bfloat16).astype(jnp.float32)


def reference_forward(params, x_nchw):
    x = _q(x_nchw)

    def conv(h, w, b):
        y = jax.lax.conv_general_dilated(
            h, _q(w), window_strides=(1, 1), padding=((1, 1), (1, 1)),
            dimension_numbers=("NCHW", "OIHW", "NCHW"))
        return y + b[None, :, None, None]

    def pool(h):
        n, c, hh, ww = h.shape
        return h.reshape(n, c, hh // 2, 2, ww // 2, 2).max(axis=(3, 5))

    h = pool(jax.nn.relu(conv(x, params["conv1_w"], params["conv1_b"])))
    h = pool(jax.nn.relu(conv(h, params["conv2_w"], params["conv2_b"])))
    h = h.reshape(x.shape[0], -1)
    h = jax.nn.relu(h @ _q(params["fc1_w"]).T + params["fc1_b"])
    return h @ _q(params["fc2_w"]).T + params["fc2_b"]


def check(params, kparams, x):
    logits = forward(kparams, x)
    jax.block_until_ready(logits)
    assert logits.shape == (x.shape[0], 10), logits.shape
    ref = reference_forward(params, x)
    diff = jnp.abs(logits - ref)
    tol = 3e-2 + 3e-2 * jnp.abs(ref)
    worst = float(jnp.max(diff - tol))
    assert bool(jnp.all(diff <= tol)), f"mismatch vs reference (excess={worst})"


# TODO(synk): loss_func / optimizer / train_model / evaluate are training-time
# machinery with no role in the forward pass; not implemented as kernels.


if __name__ == "__main__":
    key = jax.random.PRNGKey(0)
    pkey, xkey, xkey2 = jax.random.split(key, 3)
    params = init_params(pkey)
    kparams = prepare_kernel_params(params)

    # Small MNIST-like batch: batch=2, 1 channel, 16x16 spatial (NCHW like torch)
    x_small = jax.random.normal(xkey, (2, 1, 16, 16), dtype=jnp.float32)
    check(params, kparams, x_small)

    # Slightly larger batch to exercise the multi-step grid / tiling path.
    x_big = jax.random.normal(xkey2, (64, 1, 16, 16), dtype=jnp.float32)
    check(params, kparams, x_big)

    print("KERNEL_OK")
</pallas_src>

<mosaic_0001>
module attributes {stable_mosaic.version = 11 : i64} {
  func.func @kernel(%arg0: i32, %arg1: memref<288x16xbf16, #tpu.memory_space<vmem>>, %arg2: memref<3x16x64xbf16, #tpu.memory_space<vmem>>, %arg3: memref<1x32xf32, #tpu.memory_space<vmem>>, %arg4: memref<3x32x64xbf16, #tpu.memory_space<vmem>>, %arg5: memref<1x32xf32, #tpu.memory_space<vmem>>, %arg6: memref<128x32xbf16, #tpu.memory_space<vmem>>, %arg7: memref<1x32xf32, #tpu.memory_space<vmem>>, %arg8: memref<32x128xbf16, #tpu.memory_space<vmem>>, %arg9: memref<1x128xf32, #tpu.memory_space<vmem>>, %arg10: memref<16x128xf32, #tpu.memory_space<vmem>>, %arg11: memref<144x32xbf16, #tpu.memory_space<vmem>>) attributes {dimension_semantics = [#tpu.dimension_semantics<parallel>], iteration_bounds = array<i64: 1>, scalar_prefetch = 0 : i64, scratch_operands = 1 : i64, tpu.core_type = #tpu.core_type<tc>, window_params = [{transform_indices = @transform_0, window_bounds = array<i64: 288, 16>}, {pipeline_mode = #tpu.pipeline_mode<synchronous>, transform_indices = @transform_1, window_bounds = array<i64: 3, 16, 64>}, {pipeline_mode = #tpu.pipeline_mode<synchronous>, transform_indices = @transform_2, window_bounds = array<i64: 1, 32>}, {pipeline_mode = #tpu.pipeline_mode<synchronous>, transform_indices = @transform_3, window_bounds = array<i64: 3, 32, 64>}, {pipeline_mode = #tpu.pipeline_mode<synchronous>, transform_indices = @transform_4, window_bounds = array<i64: 1, 32>}, {pipeline_mode = #tpu.pipeline_mode<synchronous>, transform_indices = @transform_5, window_bounds = array<i64: 128, 32>}, {pipeline_mode = #tpu.pipeline_mode<synchronous>, transform_indices = @transform_6, window_bounds = array<i64: 1, 32>}, {pipeline_mode = #tpu.pipeline_mode<synchronous>, transform_indices = @transform_7, window_bounds = array<i64: 32, 128>}, {pipeline_mode = #tpu.pipeline_mode<synchronous>, transform_indices = @transform_8, window_bounds = array<i64: 1, 128>}, {transform_indices = @transform_9, window_bounds = array<i64: 16, 128>}]} {
    %c208 = arith.constant 208 : index
    %c0 = arith.constant 0 : index
    %0 = vector.load %arg1[%c208, %c0] : memref<288x16xbf16, #tpu.memory_space<vmem>>, vector<64x16xbf16>
    %c0_0 = arith.constant 0 : index
    %c0_1 = arith.constant 0 : index
    %c0_2 = arith.constant 0 : index
    %1 = vector.load %arg2[%c0_0, %c0_1, %c0_2] : memref<3x16x64xbf16, #tpu.memory_space<vmem>>, vector<1x16x64xbf16>
    %2 = vector.shape_cast %1 : vector<1x16x64xbf16> to vector<16x64xbf16>
    %cst = arith.constant dense<0.000000e+00> : vector<64x64xf32>
    %3 = tpu.matmul %0, %2, %cst {dimension_numbers = #tpu.dot_dimension_numbers<[1], [0], [0], [1], [0, 0, 1, 1], [], []>} : vector<64x16xbf16>, vector<16x64xbf16>, vector<64x64xf32> -> vector<64x64xf32>
    %c0_3 = arith.constant 0 : index
    %c0_4 = arith.constant 0 : index
    %4 = vector.load %arg1[%c0_3, %c0_4] : memref<288x16xbf16, #tpu.memory_space<vmem>>, vector<64x16xbf16>
    %c1 = arith.constant 1 : index
    %c0_5 = arith.constant 0 : index
    %c0_6 = arith.constant 0 : index
    %5 = vector.load %arg2[%c1, %c0_5, %c0_6] : memref<3x16x64xbf16, #tpu.memory_space<vmem>>, vector<1x16x64xbf16>
    %6 = vector.shape_cast %5 : vector<1x16x64xbf16> to vector<16x64xbf16>
    %cst_7 = arith.constant dense<0.000000e+00> : vector<64x64xf32>
    %7 = tpu.matmul %4, %6, %cst_7 {dimension_numbers = #tpu.dot_dimension_numbers<[1], [0], [0], [1], [0, 0, 1, 1], [], []>} : vector<64x16xbf16>, vector<16x64xbf16>, vector<64x64xf32> -> vector<64x64xf32>
    %8 = arith.addf %3, %7 : vector<64x64xf32>
    %c80 = arith.constant 80 : index
    %c0_8 = arith.constant 0 : index
    %9 = vector.load %arg1[%c80, %c0_8] : memref<288x16xbf16, #tpu.memory_space<vmem>>, vector<64x16xbf16>
    %c2 = arith.constant 2 : index
    %c0_9 = arith.constant 0 : index
    %c0_10 = arith.constant 0 : index
    %10 = vector.load %arg2[%c2, %c0_9, %c0_10] : memref<3x16x64xbf16, #tpu.memory_space<vmem>>, vector<1x16x64xbf16>
    %11 = vector.shape_cast %10 : vector<1x16x64xbf16> to vector<16x64xbf16>
    %cst_11 = arith.constant dense<0.000000e+00> : vector<64x64xf32>
    %12 = tpu.matmul %9, %11, %cst_11 {dimension_numbers = #tpu.dot_dimension_numbers<[1], [0], [0], [1], [0, 0, 1, 1], [], []>} : vector<64x16xbf16>, vector<16x64xbf16>, vector<64x64xf32> -> vector<64x64xf32>
    %13 = arith.addf %8, %12 : vector<64x64xf32>
    %14 = vector.extract_strided_slice %13 {offsets = [0, 0], sizes = [64, 32], strides = [1, 1]} : vector<64x64xf32> to vector<64x32xf32>
    %15 = vector.extract_strided_slice %13 {offsets = [0, 32], sizes = [64, 32], strides = [1, 1]} : vector<64x64xf32> to vector<64x32xf32>
    %16 = arith.maximumf %14, %15 : vector<64x32xf32>
    %c0_12 = arith.constant 0 : index
    %c0_13 = arith.constant 0 : index
    %17 = vector.load %arg1[%c0_12, %c0_13] : memref<288x16xbf16, #tpu.memory_space<vmem>>, vector<64x16xbf16>
    %c0_14 = arith.constant 0 : index
    %c0_15 = arith.constant 0 : index
    %c0_16 = arith.constant 0 : index
    %18 = vector.load %arg2[%c0_14, %c0_15, %c0_16] : memref<3x16x64xbf16, #tpu.memory_space<vmem>>, vector<1x16x64xbf16>
    %19 = vector.shape_cast %18 : vector<1x16x64xbf16> to vector<16x64xbf16>
    %cst_17 = arith.constant dense<0.000000e+00> : vector<64x64xf32>
    %20 = tpu.matmul %17, %19, %cst_17 {dimension_numbers = #tpu.dot_dimension_numbers<[1], [0], [0], [1], [0, 0, 1, 1], [], []>} : vector<64x16xbf16>, vector<16x64xbf16>, vector<64x64xf32> -> vector<64x64xf32>
    %c80_18 = arith.constant 80 : index
    %c0_19 = arith.constant 0 : index
    %21 = vector.load %arg1[%c80_18, %c0_19] : memref<288x16xbf16, #tpu.memory_space<vmem>>, vector<64x16xbf16>
    %c1_20 = arith.constant 1 : index
    %c0_21 = arith.constant 0 : index
    %c0_22 = arith.constant 0 : index
    %22 = vector.load %arg2[%c1_20, %c0_21, %c0_22] : memref<3x16x64xbf16, #tpu.memory_space<vmem>>, vector<1x16x64xbf16>
    %23 = vector.shape_cast %22 : vector<1x16x64xbf16> to vector<16x64xbf16>
    %cst_23 = arith.constant dense<0.000000e+00> : vector<64x64xf32>
    %24 = tpu.matmul %21, %23, %cst_23 {dimension_numbers = #tpu.dot_dimension_numbers<[1], [0], [0], [1], [0, 0, 1, 1], [], []>} : vector<64x16xbf16>, vector<16x64xbf16>, vector<64x64xf32> -> vector<64x64xf32>
    %25 = arith.addf %20, %24 : vector<64x64xf32>
    %c144 = arith.constant 144 : index
    %c0_24 = arith.constant 0 : index
    %26 = vector.load %arg1[%c144, %c0_24] : memref<288x16xbf16, #tpu.memory_space<vmem>>, vector<64x16xbf16>
    %c2_25 = arith.constant 2 : index
    %c0_26 = arith.constant 0 : index
    %c0_27 = arith.constant 0 : index
    %27 = vector.load %arg2[%c2_25, %c0_26, %c0_27] : memref<3x16x64xbf16, #tpu.memory_space<vmem>>, vector<1x16x64xbf16>
    %28 = vector.shape_cast %27 : vector<1x16x64xbf16> to vector<16x64xbf16>
    %cst_28 = arith.constant dense<0.000000e+00> : vector<64x64xf32>
    %29 = tpu.matmul %26, %28, %cst_28 {dimension_numbers = #tpu.dot_dimension_numbers<[1], [0], [0], [1], [0, 0, 1, 1], [], []>} : vector<64x16xbf16>, vector<16x64xbf16>, vector<64x64xf32> -> vector<64x64xf32>
    %30 = arith.addf %25, %29 : vector<64x64xf32>
    %31 = vector.extract_strided_slice %30 {offsets = [0, 0], sizes = [64, 32], strides = [1, 1]} : vector<64x64xf32> to vector<64x32xf32>
    %32 = vector.extract_strided_slice %30 {offsets = [0, 32], sizes = [64, 32], strides = [1, 1]} : vector<64x64xf32> to vector<64x32xf32>
    %33 = arith.maximumf %31, %32 : vector<64x32xf32>
    %34 = arith.maximumf %16, %33 : vector<64x32xf32>
    %c80_29 = arith.constant 80 : index
    %c0_30 = arith.constant 0 : index
    %35 = vector.load %arg1[%c80_29, %c0_30] : memref<288x16xbf16, #tpu.memory_space<vmem>>, vector<64x16xbf16>
    %c0_31 = arith.constant 0 : index
    %c0_32 = arith.constant 0 : index
    %c0_33 = arith.constant 0 : index
    %36 = vector.load %arg2[%c0_31, %c0_32, %c0_33] : memref<3x16x64xbf16, #tpu.memory_space<vmem>>, vector<1x16x64xbf16>
    %37 = vector.shape_cast %36 : vector<1x16x64xbf16> to vector<16x64xbf16>
    %cst_34 = arith.constant dense<0.000000e+00> : vector<64x64xf32>
    %38 = tpu.matmul %35, %37, %cst_34 {dimension_numbers = #tpu.dot_dimension_numbers<[1], [0], [0], [1], [0, 0, 1, 1], [], []>} : vector<64x16xbf16>, vector<16x64xbf16>, vector<64x64xf32> -> vector<64x64xf32>
    %c144_35 = arith.constant 144 : index
    %c0_36 = arith.constant 0 : index
    %39 = vector.load %arg1[%c144_35, %c0_36] : memref<288x16xbf16, #tpu.memory_space<vmem>>, vector<64x16xbf16>
    %c1_37 = arith.constant 1 : index
    %c0_38 = arith.constant 0 : index
    %c0_39 = arith.constant 0 : index
    %40 = vector.load %arg2[%c1_37, %c0_38, %c0_39] : memref<3x16x64xbf16, #tpu.memory_space<vmem>>, vector<1x16x64xbf16>
    %41 = vector.shape_cast %40 : vector<1x16x64xbf16> to vector<16x64xbf16>
    %cst_40 = arith.constant dense<0.000000e+00> : vector<64x64xf32>
    %42 = tpu.matmul %39, %41, %cst_40 {dimension_numbers = #tpu.dot_dimension_numbers<[1], [0], [0], [1], [0, 0, 1, 1], [], []>} : vector<64x16xbf16>, vector<16x64xbf16>, vector<64x64xf32> -> vector<64x64xf32>
    %43 = arith.addf %38, %42 : vector<64x64xf32>
    %c224 = arith.constant 224 : index
    %c0_41 = arith.constant 0 : index
    %44 = vector.load %arg1[%c224, %c0_41] : memref<288x16xbf16, #tpu.memory_space<vmem>>, vector<64x16xbf16>
    %c2_42 = arith.constant 2 : index
    %c0_43 = arith.constant 0 : index
    %c0_44 = arith.constant 0 : index
    %45 = vector.load %arg2[%c2_42, %c0_43, %c0_44] : memref<3x16x64xbf16, #tpu.memory_space<vmem>>, vector<1x16x64xbf16>
    %46 = vector.shape_cast %45 : vector<1x16x64xbf16> to vector<16x64xbf16>
    %cst_45 = arith.constant dense<0.000000e+00> : vector<64x64xf32>
    %47 = tpu.matmul %44, %46, %cst_45 {dimension_numbers = #tpu.dot_dimension_numbers<[1], [0], [0], [1], [0, 0, 1, 1], [], []>} : vector<64x16xbf16>, vector<16x64xbf16>, vector<64x64xf32> -> vector<64x64xf32>
    %48 = arith.addf %43, %47 : vector<64x64xf32>
    %49 = vector.extract_strided_slice %48 {offsets = [0, 0], sizes = [64, 32], strides = [1, 1]} : vector<64x64xf32> to vector<64x32xf32>
    %50 = vector.extract_strided_slice %48 {offsets = [0, 32], sizes = [64, 32], strides = [1, 1]} : vector<64x64xf32> to vector<64x32xf32>
    %51 = arith.maximumf %49, %50 : vector<64x32xf32>
    %c144_46 = arith.constant 144 : index
    %c0_47 = arith.constant 0 : index
    %52 = vector.load %arg1[%c144_46, %c0_47] : memref<288x16xbf16, #tpu.memory_space<vmem>>, vector<64x16xbf16>
    %c0_48 = arith.constant 0 : index
    %c0_49 = arith.constant 0 : index
    %c0_50 = arith.constant 0 : index
    %53 = vector.load %arg2[%c0_48, %c0_49, %c0_50] : memref<3x16x64xbf16, #tpu.memory_space<vmem>>, vector<1x16x64xbf16>
    %54 = vector.shape_cast %53 : vector<1x16x64xbf16> to vector<16x64xbf16>
    %cst_51 = arith.constant dense<0.000000e+00> : vector<64x64xf32>
    %55 = tpu.matmul %52, %54, %cst_51 {dimension_numbers = #tpu.dot_dimension_numbers<[1], [0], [0], [1], [0, 0, 1, 1], [], []>} : vector<64x16xbf16>, vector<16x64xbf16>, vector<64x64xf32> -> vector<64x64xf32>
    %c224_52 = arith.constant 224 : index
    %c0_53 = arith.constant 0 : index
    %56 = vector.load %arg1[%c224_52, %c0_53] : memref<288x16xbf16, #tpu.memory_space<vmem>>, vector<64x16xbf16>
    %c1_54 = arith.constant 1 : index
    %c0_55 = arith.constant 0 : index
    %c0_56 = arith.constant 0 : index
    %57 = vector.load %arg2[%c1_54, %c0_55, %c0_56] : memref<3x16x64xbf16, #tpu.memory_space<vmem>>, vector<1x16x64xbf16>
    %58 = vector.shape_cast %57 : vector<1x16x64xbf16> to vector<16x64xbf16>
    %cst_57 = arith.constant dense<0.000000e+00> : vector<64x64xf32>
    %59 = tpu.matmul %56, %58, %cst_57 {dimension_numbers = #tpu.dot_dimension_numbers<[1], [0], [0], [1], [0, 0, 1, 1], [], []>} : vector<64x16xbf16>, vector<16x64xbf16>, vector<64x64xf32> -> vector<64x64xf32>
    %60 = arith.addf %55, %59 : vector<64x64xf32>
    %c16 = arith.constant 16 : index
    %c0_58 = arith.constant 0 : index
    %61 = vector.load %arg1[%c16, %c0_58] : memref<288x16xbf16, #tpu.memory_space<vmem>>, vector<64x16xbf16>
    %c2_59 = arith.constant 2 : index
    %c0_60 = arith.constant 0 : index
    %c0_61 = arith.constant 0 : index
    %62 = vector.load %arg2[%c2_59, %c0_60, %c0_61] : memref<3x16x64xbf16, #tpu.memory_space<vmem>>, vector<1x16x64xbf16>
    %63 = vector.shape_cast %62 : vector<1x16x64xbf16> to vector<16x64xbf16>
    %cst_62 = arith.constant dense<0.000000e+00> : vector<64x64xf32>
    %64 = tpu.matmul %61, %63, %cst_62 {dimension_numbers = #tpu.dot_dimension_numbers<[1], [0], [0], [1], [0, 0, 1, 1], [], []>} : vector<64x16xbf16>, vector<16x64xbf16>, vector<64x64xf32> -> vector<64x64xf32>
    %65 = arith.addf %60, %64 : vector<64x64xf32>
    %66 = vector.extract_strided_slice %65 {offsets = [0, 0], sizes = [64, 32], strides = [1, 1]} : vector<64x64xf32> to vector<64x32xf32>
    %67 = vector.extract_strided_slice %65 {offsets = [0, 32], sizes = [64, 32], strides = [1, 1]} : vector<64x64xf32> to vector<64x32xf32>
    %68 = arith.maximumf %66, %67 : vector<64x32xf32>
    %69 = arith.maximumf %51, %68 : vector<64x32xf32>
    %c0_63 = arith.constant 0 : index
    %c0_64 = arith.constant 0 : index
    %70 = vector.load %arg3[%c0_63, %c0_64] : memref<1x32xf32, #tpu.memory_space<vmem>>, vector<1x32xf32>
    %71 = vector.broadcast %70 : vector<1x32xf32> to vector<64x32xf32>
    %72 = arith.addf %34, %71 : vector<64x32xf32>
    %cst_65 = arith.constant 0.000000e+00 : f32
    %73 = vector.broadcast %cst_65 : f32 to vector<64x32xf32>
    %74 = arith.maximumf %72, %73 : vector<64x32xf32>
    %c0_66 = arith.constant 0 : index
    %c0_67 = arith.constant 0 : index
    %75 = vector.load %arg3[%c0_66, %c0_67] : memref<1x32xf32, #tpu.memory_space<vmem>>, vector<1x32xf32>
    %76 = vector.broadcast %75 : vector<1x32xf32> to vector<64x32xf32>
    %77 = arith.addf %69, %76 : vector<64x32xf32>
    %cst_68 = arith.constant 0.000000e+00 : f32
    %78 = vector.broadcast %cst_68 : f32 to vector<64x32xf32>
    %79 = arith.maximumf %77, %78 : vector<64x32xf32>
    %80 = arith.truncf %74 : vector<64x32xf32> to vector<64x32xbf16>
    %c0_69 = arith.constant 0 : index
    %c0_70 = arith.constant 0 : index
    %81 = vector.load %arg11[%c0_69, %c0_70] : memref<144x32xbf16, #tpu.memory_space<vmem>>, vector<64x32xbf16>
    tpu.vector_store %arg11[%c0_69, %c0_70], %80 {strides = array<i32>} : memref<144x32xbf16, #tpu.memory_space<vmem>>, vector<64x32xbf16>,
    %cst_71 = arith.constant 0.000000e+00 : bf16
    %82 = vector.broadcast %cst_71 : bf16 to vector<16x32xbf16>
    %c64 = arith.constant 64 : index
    %c0_72 = arith.constant 0 : index
    %83 = vector.load %arg11[%c64, %c0_72] : memref<144x32xbf16, #tpu.memory_space<vmem>>, vector<16x32xbf16>
    tpu.vector_store %arg11[%c64, %c0_72], %82 {strides = array<i32>} : memref<144x32xbf16, #tpu.memory_space<vmem>>, vector<16x32xbf16>,
    %84 = arith.truncf %79 : vector<64x32xf32> to vector<64x32xbf16>
    %c80_73 = arith.constant 80 : index
    %c0_74 = arith.constant 0 : index
    %85 = vector.load %arg11[%c80_73, %c0_74] : memref<144x32xbf16, #tpu.memory_space<vmem>>, vector<64x32xbf16>
    tpu.vector_store %arg11[%c80_73, %c0_74], %84 {strides = array<i32>} : memref<144x32xbf16, #tpu.memory_space<vmem>>, vector<64x32xbf16>,
    %c64_75 = arith.constant 64 : index
    %c0_76 = arith.constant 0 : index
    %86 = vector.load %arg11[%c64_75, %c0_76] : memref<144x32xbf16, #tpu.memory_space<vmem>>, vector<64x32xbf16>
    %c0_77 = arith.constant 0 : index
    %c0_78 = arith.constant 0 : index
    %c0_79 = arith.constant 0 : index
    %87 = vector.load %arg4[%c0_77, %c0_78, %c0_79] : memref<3x32x64xbf16, #tpu.memory_space<vmem>>, vector<1x32x64xbf16>
    %88 = vector.shape_cast %87 : vector<1x32x64xbf16> to vector<32x64xbf16>
    %cst_80 = arith.constant dense<0.000000e+00> : vector<64x64xf32>
    %89 = tpu.matmul %86, %88, %cst_80 {dimension_numbers = #tpu.dot_dimension_numbers<[1], [0], [0], [1], [0, 0, 1, 1], [], []>} : vector<64x32xbf16>, vector<32x64xbf16>, vector<64x64xf32> -> vector<64x64xf32>
    %c0_81 = arith.constant 0 : index
    %c0_82 = arith.constant 0 : index
    %90 = vector.load %arg11[%c0_81, %c0_82] : memref<144x32xbf16, #tpu.memory_space<vmem>>, vector<64x32xbf16>
    %c1_83 = arith.constant 1 : index
    %c0_84 = arith.constant 0 : index
    %c0_85 = arith.constant 0 : index
    %91 = vector.load %arg4[%c1_83, %c0_84, %c0_85] : memref<3x32x64xbf16, #tpu.memory_space<vmem>>, vector<1x32x64xbf16>
    %92 = vector.shape_cast %91 : vector<1x32x64xbf16> to vector<32x64xbf16>
    %cst_86 = arith.constant dense<0.000000e+00> : vector<64x64xf32>
    %93 = tpu.matmul %90, %92, %cst_86 {dimension_numbers = #tpu.dot_dimension_numbers<[1], [0], [0], [1], [0, 0, 1, 1], [], []>} : vector<64x32xbf16>, vector<32x64xbf16>, vector<64x64xf32> -> vector<64x64xf32>
    %94 = arith.addf %89, %93 : vector<64x64xf32>
    %c80_87 = arith.constant 80 : index
    %c0_88 = arith.constant 0 : index
    %95 = vector.load %arg11[%c80_87, %c0_88] : memref<144x32xbf16, #tpu.memory_space<vmem>>, vector<64x32xbf16>
    %c2_89 = arith.constant 2 : index
    %c0_90 = arith.constant 0 : index
    %c0_91 = arith.constant 0 : index
    %96 = vector.load %arg4[%c2_89, %c0_90, %c0_91] : memref<3x32x64xbf16, #tpu.memory_space<vmem>>, vector<1x32x64xbf16>
    %97 = vector.shape_cast %96 : vector<1x32x64xbf16> to vector<32x64xbf16>
    %cst_92 = arith.constant dense<0.000000e+00> : vector<64x64xf32>
    %98 = tpu.matmul %95, %97, %cst_92 {dimension_numbers = #tpu.dot_dimension_numbers<[1], [0], [0], [1], [0, 0, 1, 1], [], []>} : vector<64x32xbf16>, vector<32x64xbf16>, vector<64x64xf32> -> vector<64x64xf32>
    %99 = arith.addf %94, %98 : vector<64x64xf32>
    %100 = vector.extract_strided_slice %99 {offsets = [0, 0], sizes = [64, 32], strides = [1, 1]} : vector<64x64xf32> to vector<64x32xf32>
    %101 = vector.extract_strided_slice %99 {offsets = [0, 32], sizes = [64, 32], strides = [1, 1]} : vector<64x64xf32> to vector<64x32xf32>
    %102 = arith.maximumf %100, %101 : vector<64x32xf32>
    %c0_93 = arith.constant 0 : index
    %c0_94 = arith.constant 0 : index
    %103 = vector.load %arg11[%c0_93, %c0_94] : memref<144x32xbf16, #tpu.memory_space<vmem>>, vector<64x32xbf16>
    %c0_95 = arith.constant 0 : index
    %c0_96 = arith.constant 0 : index
    %c0_97 = arith.constant 0 : index
    %104 = vector.load %arg4[%c0_95, %c0_96, %c0_97] : memref<3x32x64xbf16, #tpu.memory_space<vmem>>, vector<1x32x64xbf16>
    %105 = vector.shape_cast %104 : vector<1x32x64xbf16> to vector<32x64xbf16>
    %cst_98 = arith.constant dense<0.000000e+00> : vector<64x64xf32>
    %106 = tpu.matmul %103, %105, %cst_98 {dimension_numbers = #tpu.dot_dimension_numbers<[1], [0], [0], [1], [0, 0, 1, 1], [], []>} : vector<64x32xbf16>, vector<32x64xbf16>, vector<64x64xf32> -> vector<64x64xf32>
    %c80_99 = arith.constant 80 : index
    %c0_100 = arith.constant 0 : index
    %107 = vector.load %arg11[%c80_99, %c0_100] : memref<144x32xbf16, #tpu.memory_space<vmem>>, vector<64x32xbf16>
    %c1_101 = arith.constant 1 : index
    %c0_102 = arith.constant 0 : index
    %c0_103 = arith.constant 0 : index
    %108 = vector.load %arg4[%c1_101, %c0_102, %c0_103] : memref<3x32x64xbf16, #tpu.memory_space<vmem>>, vector<1x32x64xbf16>
    %109 = vector.shape_cast %108 : vector<1x32x64xbf16> to vector<32x64xbf16>
    %cst_104 = arith.constant dense<0.000000e+00> : vector<64x64xf32>
    %110 = tpu.matmul %107, %109, %cst_104 {dimension_numbers = #tpu.dot_dimension_numbers<[1], [0], [0], [1], [0, 0, 1, 1], [], []>} : vector<64x32xbf16>, vector<32x64xbf16>, vector<64x64xf32> -> vector<64x64xf32>
    %111 = arith.addf %106, %110 : vector<64x64xf32>
    %c16_105 = arith.constant 16 : index
    %c0_106 = arith.constant 0 : index
    %112 = vector.load %arg11[%c16_105, %c0_106] : memref<144x32xbf16, #tpu.memory_space<vmem>>, vector<64x32xbf16>
    %c2_107 = arith.constant 2 : index
    %c0_108 = arith.constant 0 : index
    %c0_109 = arith.constant 0 : index
    %113 = vector.load %arg4[%c2_107, %c0_108, %c0_109] : memref<3x32x64xbf16, #tpu.memory_space<vmem>>, vector<1x32x64xbf16>
    %114 = vector.shape_cast %113 : vector<1x32x64xbf16> to vector<32x64xbf16>
    %cst_110 = arith.constant dense<0.000000e+00> : vector<64x64xf32>
    %115 = tpu.matmul %112, %114, %cst_110 {dimension_numbers = #tpu.dot_dimension_numbers<[1], [0], [0], [1], [0, 0, 1, 1], [], []>} : vector<64x32xbf16>, vector<32x64xbf16>, vector<64x64xf32> -> vector<64x64xf32>
    %116 = arith.addf %111, %115 : vector<64x64xf32>
    %117 = vector.extract_strided_slice %116 {offsets = [0, 0], sizes = [64, 32], strides = [1, 1]} : vector<64x64xf32> to vector<64x32xf32>
    %118 = vector.extract_strided_slice %116 {offsets = [0, 32], sizes = [64, 32], strides = [1, 1]} : vector<64x64xf32> to vector<64x32xf32>
    %119 = arith.maximumf %117, %118 : vector<64x32xf32>
    %120 = arith.maximumf %102, %119 : vector<64x32xf32>
    %c0_111 = arith.constant 0 : index
    %c0_112 = arith.constant 0 : index
    %121 = vector.load %arg5[%c0_111, %c0_112] : memref<1x32xf32, #tpu.memory_space<vmem>>, vector<1x32xf32>
    %122 = vector.broadcast %121 : vector<1x32xf32> to vector<64x32xf32>
    %123 = arith.addf %120, %122 : vector<64x32xf32>
    %cst_113 = arith.constant 0.000000e+00 : f32
    %124 = vector.broadcast %cst_113 : f32 to vector<64x32xf32>
    %125 = arith.maximumf %123, %124 : vector<64x32xf32>
    %126 = arith.truncf %125 : vector<64x32xf32> to vector<64x32xbf16>
    %127 = vector.extract_strided_slice %126 {offsets = [0, 0], sizes = [16, 32], strides = [1, 1]} : vector<64x32xbf16> to vector<16x32xbf16>
    %c0_114 = arith.constant 0 : index
    %c0_115 = arith.constant 0 : index
    %128 = vector.load %arg6[%c0_114, %c0_115] : memref<128x32xbf16, #tpu.memory_space<vmem>>, vector<32x32xbf16>
    %cst_116 = arith.constant dense<0.000000e+00> : vector<16x32xf32>
    %129 = tpu.matmul %127, %128, %cst_116 {dimension_numbers = #tpu.dot_dimension_numbers<[1], [0], [0], [1], [0, 0, 1, 1], [], []>} : vector<16x32xbf16>, vector<32x32xbf16>, vector<16x32xf32> -> vector<16x32xf32>
    %130 = vector.extract_strided_slice %126 {offsets = [16, 0], sizes = [16, 32], strides = [1, 1]} : vector<64x32xbf16> to vector<16x32xbf16>
    %c32 = arith.constant 32 : index
    %c0_117 = arith.constant 0 : index
    %131 = vector.load %arg6[%c32, %c0_117] : memref<128x32xbf16, #tpu.memory_space<vmem>>, vector<32x32xbf16>
    %cst_118 = arith.constant dense<0.000000e+00> : vector<16x32xf32>
    %132 = tpu.matmul %130, %131, %cst_118 {dimension_numbers = #tpu.dot_dimension_numbers<[1], [0], [0], [1], [0, 0, 1, 1], [], []>} : vector<16x32xbf16>, vector<32x32xbf16>, vector<16x32xf32> -> vector<16x32xf32>
    %133 = arith.addf %129, %132 : vector<16x32xf32>
    %134 = vector.extract_strided_slice %126 {offsets = [32, 0], sizes = [16, 32], strides = [1, 1]} : vector<64x32xbf16> to vector<16x32xbf16>
    %c64_119 = arith.constant 64 : index
    %c0_120 = arith.constant 0 : index
    %135 = vector.load %arg6[%c64_119, %c0_120] : memref<128x32xbf16, #tpu.memory_space<vmem>>, vector<32x32xbf16>
    %cst_121 = arith.constant dense<0.000000e+00> : vector<16x32xf32>
    %136 = tpu.matmul %134, %135, %cst_121 {dimension_numbers = #tpu.dot_dimension_numbers<[1], [0], [0], [1], [0, 0, 1, 1], [], []>} : vector<16x32xbf16>, vector<32x32xbf16>, vector<16x32xf32> -> vector<16x32xf32>
    %137 = arith.addf %133, %136 : vector<16x32xf32>
    %138 = vector.extract_strided_slice %126 {offsets = [48, 0], sizes = [16, 32], strides = [1, 1]} : vector<64x32xbf16> to vector<16x32xbf16>
    %c96 = arith.constant 96 : index
    %c0_122 = arith.constant 0 : index
    %139 = vector.load %arg6[%c96, %c0_122] : memref<128x32xbf16, #tpu.memory_space<vmem>>, vector<32x32xbf16>
    %cst_123 = arith.constant dense<0.000000e+00> : vector<16x32xf32>
    %140 = tpu.matmul %138, %139, %cst_123 {dimension_numbers = #tpu.dot_dimension_numbers<[1], [0], [0], [1], [0, 0, 1, 1], [], []>} : vector<16x32xbf16>, vector<32x32xbf16>, vector<16x32xf32> -> vector<16x32xf32>
    %141 = arith.addf %137, %140 : vector<16x32xf32>
    %c0_124 = arith.constant 0 : index
    %c0_125 = arith.constant 0 : index
    %142 = vector.load %arg7[%c0_124, %c0_125] : memref<1x32xf32, #tpu.memory_space<vmem>>, vector<1x32xf32>
    %143 = vector.broadcast %142 : vector<1x32xf32> to vector<16x32xf32>
    %144 = arith.addf %141, %143 : vector<16x32xf32>
    %cst_126 = arith.constant 0.000000e+00 : f32
    %145 = vector.broadcast %cst_126 : f32 to vector<16x32xf32>
    %146 = arith.maximumf %144, %145 : vector<16x32xf32>
    %147 = arith.truncf %146 : vector<16x32xf32> to vector<16x32xbf16>
    %c0_127 = arith.constant 0 : index
    %c0_128 = arith.constant 0 : index
    %148 = vector.load %arg8[%c0_127, %c0_128] : memref<32x128xbf16, #tpu.memory_space<vmem>>, vector<32x128xbf16>
    %cst_129 = arith.constant dense<0.000000e+00> : vector<16x128xf32>
    %149 = tpu.matmul %147, %148, %cst_129 {dimension_numbers = #tpu.dot_dimension_numbers<[1], [0], [0], [1], [0, 0, 1, 1], [], []>} : vector<16x32xbf16>, vector<32x128xbf16>, vector<16x128xf32> -> vector<16x128xf32>
    %c0_130 = arith.constant 0 : index
    %c0_131 = arith.constant 0 : index
    %150 = vector.load %arg9[%c0_130, %c0_131] : memref<1x128xf32, #tpu.memory_space<vmem>>, vector<1x128xf32>
    %151 = vector.broadcast %150 : vector<1x128xf32> to vector<16x128xf32>
    %152 = arith.addf %149, %151 : vector<16x128xf32>
    %c0_132 = arith.constant 0 : index
    %c0_133 = arith.constant 0 : index
    %153 = vector.load %arg10[%c0_132, %c0_133] : memref<16x128xf32, #tpu.memory_space<vmem>>, vector<16x128xf32>
    tpu.vector_store %arg10[%c0_132, %c0_133], %152 {strides = array<i32>} : memref<16x128xf32, #tpu.memory_space<vmem>>, vector<16x128xf32>,
    return
  }
  func.func @transform_0(%arg0: i32) -> (i32, i32) {
    %c0_i32 = arith.constant 0 : i32
    %c0_i32_0 = arith.constant 0 : i32
    return %arg0, %c0_i32 : i32, i32
  }
  func.func @transform_1(%arg0: i32) -> (i32, i32, i32) {
    %c0_i32 = arith.constant 0 : i32
    %c0_i32_0 = arith.constant 0 : i32
    %c0_i32_1 = arith.constant 0 : i32
    %c0_i32_2 = arith.constant 0 : i32
    return %c0_i32, %c0_i32_0, %c0_i32_1 : i32, i32, i32
  }
  func.func @transform_2(%arg0: i32) -> (i32, i32) {
    %c0_i32 = arith.constant 0 : i32
    %c0_i32_0 = arith.constant 0 : i32
    %c0_i32_1 = arith.constant 0 : i32
    return %c0_i32, %c0_i32_0 : i32, i32
  }
  func.func @transform_3(%arg0: i32) -> (i32, i32, i32) {
    %c0_i32 = arith.constant 0 : i32
    %c0_i32_0 = arith.constant 0 : i32
    %c0_i32_1 = arith.constant 0 : i32
    %c0_i32_2 = arith.constant 0 : i32
    return %c0_i32, %c0_i32_0, %c0_i32_1 : i32, i32, i32
  }
  func.func @transform_4(%arg0: i32) -> (i32, i32) {
    %c0_i32 = arith.constant 0 : i32
    %c0_i32_0 = arith.constant 0 : i32
    %c0_i32_1 = arith.constant 0 : i32
    return %c0_i32, %c0_i32_0 : i32, i32
  }
  func.func @transform_5(%arg0: i32) -> (i32, i32) {
    %c0_i32 = arith.constant 0 : i32
    %c0_i32_0 = arith.constant 0 : i32
    %c0_i32_1 = arith.constant 0 : i32
    return %c0_i32, %c0_i32_0 : i32, i32
  }
  func.func @transform_6(%arg0: i32) -> (i32, i32) {
    %c0_i32 = arith.constant 0 : i32
    %c0_i32_0 = arith.constant 0 : i32
    %c0_i32_1 = arith.constant 0 : i32
    return %c0_i32, %c0_i32_0 : i32, i32
  }
  func.func @transform_7(%arg0: i32) -> (i32, i32) {
    %c0_i32 = arith.constant 0 : i32
    %c0_i32_0 = arith.constant 0 : i32
    %c0_i32_1 = arith.constant 0 : i32
    return %c0_i32, %c0_i32_0 : i32, i32
  }
  func.func @transform_8(%arg0: i32) -> (i32, i32) {
    %c0_i32 = arith.constant 0 : i32
    %c0_i32_0 = arith.constant 0 : i32
    %c0_i32_1 = arith.constant 0 : i32
    return %c0_i32, %c0_i32_0 : i32, i32
  }
  func.func @transform_9(%arg0: i32) -> (i32, i32) {
    %c0_i32 = arith.constant 0 : i32
    %c0_i32_0 = arith.constant 0 : i32
    return %arg0, %c0_i32 : i32, i32
  }
}

</mosaic_0001>

<llo_original>
// kernel: forward.1
$region0: #{forward.1}
  #allocation0 [shape = 'u32[]', space=smem, size = 0x4, offset = 0x4, fixed_abs, tag = 'smem constant byte address 0x4 - core index']
  #allocation1 [shape = 'u32[72,128]{1,0:T(1,128)}', space=vmem, size = 0x9000, scoped, tag = 'internal scratch']
  #allocation2 [shape = 'bf16[144,32]{1,0:T(8,128)(2,1)}', space=vmem, size = 0x9000, scoped, tag = 'scratch operand']
  %s0 = inlined_call_operand.vmem [shape: bf16[288,16], index: 0, kind: input, shape index: {}]
  %s1 = inlined_call_operand.vmem [shape: bf16[3,16,64], index: 1, kind: input, shape index: {}]
  %s2 = inlined_call_operand.vmem [shape: f32[1,32], index: 2, kind: input, shape index: {}]
  %s3 = inlined_call_operand.vmem [shape: bf16[3,32,64], index: 3, kind: input, shape index: {}]
  %s4 = inlined_call_operand.vmem [shape: f32[1,32], index: 4, kind: input, shape index: {}]
  %s5 = inlined_call_operand.vmem [shape: bf16[128,32], index: 5, kind: input, shape index: {}]
  %s6 = inlined_call_operand.vmem [shape: f32[1,32], index: 6, kind: input, shape index: {}]
  %s7 = inlined_call_operand.vmem [shape: bf16[32,128], index: 7, kind: input, shape index: {}]
  %s8 = inlined_call_operand.vmem [shape: f32[1,128], index: 8, kind: input, shape index: {}]
  %s9 = inlined_call_operand.vmem [shape: f32[16,128], index: 9, kind: output, shape index: {}]
  %s10 = sld [smem:[#allocation0]]
  $region46: #{forward.1} parent=0
    _
  %s12 = ssub.s32 1, %s10
  %s13 = scalar_select 0, %s12, %s10
  // Predicated region
  $region2: #{forward.1} parent=0 // pred_check
    _
  $region3: #{forward.1} parent=0 // pred_check_branch
    %15 = sbr.rel (0) target = $region5
  $region4: #{forward.1} parent=0 // pred_region
    _
  $region5: #{forward.1} parent=0 // pred_fallthru
    _
  // Predicated region
  $region6: #{forward.1} parent=0 // pred_check
    _
  $region7: #{forward.1} parent=0 // pred_check_branch
    %17 = sbr.rel (0) target = $region9
  $region8: #{forward.1} parent=0 // pred_region
    _
  $region9: #{forward.1} parent=0 // pred_fallthru
    _
  // Predicated region
  $region10: #{forward.1} parent=0 // pred_check
    _
  $region11: #{forward.1} parent=0 // pred_check_branch
    %19 = sbr.rel (0) target = $region13
  $region12: #{forward.1} parent=0 // pred_region
    _
  $region13: #{forward.1} parent=0 // pred_fallthru
    _
  // Predicated region
  $region14: #{forward.1} parent=0 // pred_check
    _
  $region15: #{forward.1} parent=0 // pred_check_branch
    %21 = sbr.rel (0) target = $region17
  $region16: #{forward.1} parent=0 // pred_region
    _
  $region17: #{forward.1} parent=0 // pred_fallthru
    _
  // Predicated region
  $region18: #{forward.1} parent=0 // pred_check
    _
  $region19: #{forward.1} parent=0 // pred_check_branch
    %23 = sbr.rel (0) target = $region21
  $region20: #{forward.1} parent=0 // pred_region
    _
  $region21: #{forward.1} parent=0 // pred_fallthru
    _
  // Predicated region
  $region22: #{forward.1} parent=0 // pred_check
    _
  $region23: #{forward.1} parent=0 // pred_check_branch
    %25 = sbr.rel (0) target = $region25
  $region24: #{forward.1} parent=0 // pred_region
    _
  $region25: #{forward.1} parent=0 // pred_fallthru
    _
  // Predicated region
  $region26: #{forward.1} parent=0 // pred_check
    _
  $region27: #{forward.1} parent=0 // pred_check_branch
    %27 = sbr.rel (0) target = $region29
  $region28: #{forward.1} parent=0 // pred_region
    _
  $region29: #{forward.1} parent=0 // pred_fallthru
    _
  // Predicated region
  $region30: #{forward.1} parent=0 // pred_check
    _
  $region31: #{forward.1} parent=0 // pred_check_branch
    %29 = sbr.rel (0) target = $region33
  $region32: #{forward.1} parent=0 // pred_region
    _
  $region33: #{forward.1} parent=0 // pred_fallthru
    _
  // Predicated region
  $region34: #{forward.1} parent=0 // pred_check
    _
  $region35: #{forward.1} parent=0 // pred_check_branch
    %31 = sbr.rel (0) target = $region37
  $region36: #{forward.1} parent=0 // pred_region
    _
  $region37: #{forward.1} parent=0 // pred_fallthru
    _
  %v33 = vld [vmem:[%s0 + $0x68] sm:$0xf]
  %v34 = vld [vmem:[%s0 + $0x6c] sm:$0xf]
  %v35 = vld [vmem:[%s0 + $0x70] sm:$0xf]
  %v36 = vld [vmem:[%s0 + $0x74] sm:$0xf]
  %v37 = vld [vmem:[%s0 + $0x78] sm:$0xf]
  %v38 = vld [vmem:[%s0 + $0x7c] sm:$0xf]
  %v39 = vld [vmem:[%s0 + $0x80] sm:$0xf]
  %v40 = vld [vmem:[%s0 + $0x84] sm:$0xf]
  %v41 = vld [vmem:[%s1] sm:$0xf]
  %v42 = vld [vmem:[%s1 + $0x4] sm:$0xf]
  %v43 = vld [vmem:[%s0] sm:$0xf]
  %v44 = vld [vmem:[%s0 + $0x4] sm:$0xf]
  %v45 = vld [vmem:[%s0 + $0x8] sm:$0xf]
  %v46 = vld [vmem:[%s0 + $0xc] sm:$0xf]
  %v47 = vld [vmem:[%s0 + $0x10] sm:$0xf]
  %v48 = vld [vmem:[%s0 + $0x14] sm:$0xf]
  %v49 = vld [vmem:[%s0 + $0x18] sm:$0xf]
  %v50 = vld [vmem:[%s0 + $0x1c] sm:$0xf]
  %s51 = scalar_lea.vmem %s1, 8
  %v52 = vld [vmem:[%s51] sm:$0xf]
  %v53 = vld [vmem:[%s51 + $0x4] sm:$0xf]
  %v62 = vunpack.c.l.b16 %v43
  %v63 = vunpack.c.l.b16 %v44
  %v64 = vunpack.c.l.b16 %v45
  %v65 = vunpack.c.l.b16 %v46
  %v66 = vunpack.c.l.b16 %v47
  %v67 = vunpack.c.l.b16 %v48
  %v68 = vunpack.c.l.b16 %v49
  %v69 = vunpack.c.l.b16 %v50
  %v70 = vpack.c.b16 %v63, %v62
  %v71 = vpack.c.b16 %v65, %v64
  %v72 = vpack.c.b16 %v67, %v66
  %v73 = vpack.c.b16 %v69, %v68
  %v76 = vunpack.c.l.b16 %v52
  %v77 = vunpack.c.l.b16 %v53
  %v78 = vpack.c.b16 %v77, %v76
  %vm80 = vcmask 130048
  %v82 = vsel %vm80, %v70, 0
  %v85 = vsel %vm80, %v71, 0
  %v88 = vsel %vm80, %v72, 0
  %v91 = vsel %vm80, %v73, 0
  %93 = vmatpush.bf16.msra.mxu0 0
  %94 = vmatpush.bf16.msra.mxu0 0
  %95 = vmatpush.bf16.msra.mxu0 0
  %96 = vmatpush.bf16.msra.mxu0 0
  %97 = vmatpush.bf16.msra.mxu0 0
  %98 = vmatpush.bf16.msra.mxu0 0
  %99 = vmatpush.bf16.msra.mxu0 0
  %100 = vmatpush.bf16.msra.mxu0 %v78
  %101 = vmatmul.bf16.gmra.mxu0 %v82
  %v102 = vpop.f32.mrf.mxu0
  %v103 = vadd.f32 0.0, %v102
  %v104 = vpop.f32.mrf.mxu0
  %v105 = vadd.f32 0.0, %v104
  %106 = vmatmul.bf16.gmra.mxu0 %v85
  %v107 = vpop.f32.mrf.mxu0
  %v108 = vadd.f32 0.0, %v107
  %v109 = vpop.f32.mrf.mxu0
  %v110 = vadd.f32 0.0, %v109
  %111 = vmatmul.bf16.gmra.mxu0 %v88
  %v112 = vpop.f32.mrf.mxu0
  %v113 = vadd.f32 0.0, %v112
  %v114 = vpop.f32.mrf.mxu0
  %v115 = vadd.f32 0.0, %v114
  %116 = vmatmul.bf16.gmra.mxu0 %v91
  %v117 = vpop.f32.mrf.mxu0
  %v118 = vadd.f32 0.0, %v117
  %v119 = vpop.f32.mrf.mxu0
  %v120 = vadd.f32 0.0, %v119
  %121 = vdwg.mxu0
  %v130 = vunpack.c.l.b16 %v33
  %v131 = vunpack.c.l.b16 %v34
  %v132 = vunpack.c.l.b16 %v35
  %v133 = vunpack.c.l.b16 %v36
  %v134 = vunpack.c.l.b16 %v37
  %v135 = vunpack.c.l.b16 %v38
  %v136 = vunpack.c.l.b16 %v39
  %v137 = vunpack.c.l.b16 %v40
  %v138 = vpack.c.b16 %v131, %v130
  %v139 = vpack.c.b16 %v133, %v132
  %v140 = vpack.c.b16 %v135, %v134
  %v141 = vpack.c.b16 %v137, %v136
  %v144 = vunpack.c.l.b16 %v41
  %v145 = vunpack.c.l.b16 %v42
  %v146 = vpack.c.b16 %v145, %v144
  %v149 = vsel %vm80, %v138, 0
  %v152 = vsel %vm80, %v139, 0
  %v155 = vsel %vm80, %v140, 0
  %v158 = vsel %vm80, %v141, 0
  %160 = vmatpush.bf16.msra.mxu0 0
  %161 = vmatpush.bf16.msra.mxu0 0
  %162 = vmatpush.bf16.msra.mxu0 0
  %163 = vmatpush.bf16.msra.mxu0 0
  %164 = vmatpush.bf16.msra.mxu0 0
  %165 = vmatpush.bf16.msra.mxu0 0
  %166 = vmatpush.bf16.msra.mxu0 0
  %167 = vmatpush.bf16.msra.mxu0 %v146
  %168 = vmatmul.bf16.gmra.mxu0 %v149
  %v169 = vpop.f32.mrf.mxu0
  %v170 = vadd.f32 %v103, %v169
  %v171 = vpop.f32.mrf.mxu0
  %v172 = vadd.f32 %v105, %v171
  %173 = vmatmul.bf16.gmra.mxu0 %v152
  %v174 = vpop.f32.mrf.mxu0
  %v175 = vadd.f32 %v108, %v174
  %v176 = vpop.f32.mrf.mxu0
  %v177 = vadd.f32 %v110, %v176
  %178 = vmatmul.bf16.gmra.mxu0 %v155
  %v179 = vpop.f32.mrf.mxu0
  %v180 = vadd.f32 %v113, %v179
  %v181 = vpop.f32.mrf.mxu0
  %v182 = vadd.f32 %v115, %v181
  %183 = vmatmul.bf16.gmra.mxu0 %v158
  %v184 = vpop.f32.mrf.mxu0
  %v185 = vadd.f32 %v118, %v184
  %v186 = vpop.f32.mrf.mxu0
  %v187 = vadd.f32 %v120, %v186
  %188 = vdwg.mxu0
  %v189 = vld [vmem:[%s0 + $0x28] sm:$0xf]
  %v190 = vld [vmem:[%s0 + $0x2c] sm:$0xf]
  %v191 = vld [vmem:[%s0 + $0x30] sm:$0xf]
  %v192 = vld [vmem:[%s0 + $0x34] sm:$0xf]
  %v193 = vld [vmem:[%s0 + $0x38] sm:$0xf]
  %v194 = vld [vmem:[%s0 + $0x3c] sm:$0xf]
  %v195 = vld [vmem:[%s0 + $0x40] sm:$0xf]
  %v196 = vld [vmem:[%s0 + $0x44] sm:$0xf]
  %s197 = scalar_lea.vmem %s1, 16
  %v198 = vld [vmem:[%s197] sm:$0xf]
  %v199 = vld [vmem:[%s197 + $0x4] sm:$0xf]
  %v208 = vunpack.c.l.b16 %v189
  %v209 = vunpack.c.l.b16 %v190
  %v210 = vunpack.c.l.b16 %v191
  %v211 = vunpack.c.l.b16 %v192
  %v212 = vunpack.c.l.b16 %v193
  %v213 = vunpack.c.l.b16 %v194
  %v214 = vunpack.c.l.b16 %v195
  %v215 = vunpack.c.l.b16 %v196
  %v216 = vpack.c.b16 %v209, %v208
  %v217 = vpack.c.b16 %v211, %v210
  %v218 = vpack.c.b16 %v213, %v212
  %v219 = vpack.c.b16 %v215, %v214
  %v222 = vunpack.c.l.b16 %v198
  %v223 = vunpack.c.l.b16 %v199
  %v224 = vpack.c.b16 %v223, %v222
  %v227 = vsel %vm80, %v216, 0
  %v230 = vsel %vm80, %v217, 0
  %v233 = vsel %vm80, %v218, 0
  %v236 = vsel %vm80, %v219, 0
  %238 = vmatpush.bf16.msra.mxu0 0
  %239 = vmatpush.bf16.msra.mxu0 0
  %240 = vmatpush.bf16.msra.mxu0 0
  %241 = vmatpush.bf16.msra.mxu0 0
  %242 = vmatpush.bf16.msra.mxu0 0
  %243 = vmatpush.bf16.msra.mxu0 0
  %244 = vmatpush.bf16.msra.mxu0 0
  %245 = vmatpush.bf16.msra.mxu0 %v224
  %246 = vmatmul.bf16.gmra.mxu0 %v227
  %v247 = vpop.f32.mrf.mxu0
  %v248 = vadd.f32 0.0, %v247
  %v249 = vpop.f32.mrf.mxu0
  %v250 = vadd.f32 0.0, %v249
  %251 = vmatmul.bf16.gmra.mxu0 %v230
  %v252 = vpop.f32.mrf.mxu0
  %v253 = vadd.f32 0.0, %v252
  %v254 = vpop.f32.mrf.mxu0
  %v255 = vadd.f32 0.0, %v254
  %256 = vmatmul.bf16.gmra.mxu0 %v233
  %v257 = vpop.f32.mrf.mxu0
  %v258 = vadd.f32 0.0, %v257
  %v259 = vpop.f32.mrf.mxu0
  %v260 = vadd.f32 0.0, %v259
  %261 = vmatmul.bf16.gmra.mxu0 %v236
  %v262 = vpop.f32.mrf.mxu0
  %v263 = vadd.f32 0.0, %v262
  %v264 = vpop.f32.mrf.mxu0
  %v265 = vadd.f32 0.0, %v264
  %266 = vdwg.mxu0
  %v267 = vadd.f32 %v170, %v248
  %v268 = vadd.f32 %v172, %v250
  %v269 = vadd.f32 %v175, %v253
  %v270 = vadd.f32 %v177, %v255
  %v271 = vadd.f32 %v180, %v258
  %v272 = vadd.f32 %v182, %v260
  %v273 = vadd.f32 %v185, %v263
  %v274 = vadd.f32 %v187, %v265
  %283 = vrot.lane.b32.xlu0 %v267, 96
  %v284 = vpop.permute.xlu0 %283
  %285 = vrot.lane.b32.xlu0 %v268, 96
  %v286 = vpop.permute.xlu0 %285
  %287 = vrot.lane.b32.xlu0 %v269, 96
  %v288 = vpop.permute.xlu0 %287
  %289 = vrot.lane.b32.xlu0 %v270, 96
  %v290 = vpop.permute.xlu0 %289
  %291 = vrot.lane.b32.xlu0 %v271, 96
  %v292 = vpop.permute.xlu0 %291
  %293 = vrot.lane.b32.xlu0 %v272, 96
  %v294 = vpop.permute.xlu0 %293
  %295 = vrot.lane.b32.xlu0 %v273, 96
  %v296 = vpop.permute.xlu0 %295
  %297 = vrot.lane.b32.xlu0 %v274, 96
  %v298 = vpop.permute.xlu0 %297
  %v307 = vmax.f32 %v267, %v284
  %v308 = vmax.f32 %v268, %v286
  %v309 = vmax.f32 %v269, %v288
  %v310 = vmax.f32 %v270, %v290
  %v311 = vmax.f32 %v271, %v292
  %v312 = vmax.f32 %v272, %v294
  %v313 = vmax.f32 %v273, %v296
  %v314 = vmax.f32 %v274, %v298
  %315 = vmatpush.bf16.msra.mxu0 0
  %316 = vmatpush.bf16.msra.mxu0 0
  %317 = vmatpush.bf16.msra.mxu0 0
  %318 = vmatpush.bf16.msra.mxu0 0
  %319 = vmatpush.bf16.msra.mxu0 0
  %320 = vmatpush.bf16.msra.mxu0 0
  %321 = vmatpush.bf16.msra.mxu0 0
  %322 = vmatpush.bf16.msra.mxu0 %v78
  %323 = vmatmul.bf16.gmra.mxu0 %v227
  %v324 = vpop.f32.mrf.mxu0
  %v325 = vadd.f32 0.0, %v324
  %v326 = vpop.f32.mrf.mxu0
  %v327 = vadd.f32 0.0, %v326
  %328 = vmatmul.bf16.gmra.mxu0 %v230
  %v329 = vpop.f32.mrf.mxu0
  %v330 = vadd.f32 0.0, %v329
  %v331 = vpop.f32.mrf.mxu0
  %v332 = vadd.f32 0.0, %v331
  %333 = vmatmul.bf16.gmra.mxu0 %v233
  %v334 = vpop.f32.mrf.mxu0
  %v335 = vadd.f32 0.0, %v334
  %v336 = vpop.f32.mrf.mxu0
  %v337 = vadd.f32 0.0, %v336
  %338 = vmatmul.bf16.gmra.mxu0 %v236
  %v339 = vpop.f32.mrf.mxu0
  %v340 = vadd.f32 0.0, %v339
  %v341 = vpop.f32.mrf.mxu0
  %v342 = vadd.f32 0.0, %v341
  %343 = vdwg.mxu0
  %344 = vmatpush.bf16.msra.mxu0 0
  %345 = vmatpush.bf16.msra.mxu0 0
  %346 = vmatpush.bf16.msra.mxu0 0
  %347 = vmatpush.bf16.msra.mxu0 0
  %348 = vmatpush.bf16.msra.mxu0 0
  %349 = vmatpush.bf16.msra.mxu0 0
  %350 = vmatpush.bf16.msra.mxu0 0
  %351 = vmatpush.bf16.msra.mxu0 %v146
  %352 = vmatmul.bf16.gmra.mxu0 %v82
  %v353 = vpop.f32.mrf.mxu0
  %v354 = vadd.f32 %v325, %v353
  %v355 = vpop.f32.mrf.mxu0
  %v356 = vadd.f32 %v327, %v355
  %357 = vmatmul.bf16.gmra.mxu0 %v85
  %v358 = vpop.f32.mrf.mxu0
  %v359 = vadd.f32 %v330, %v358
  %v360 = vpop.f32.mrf.mxu0
  %v361 = vadd.f32 %v332, %v360
  %362 = vmatmul.bf16.gmra.mxu0 %v88
  %v363 = vpop.f32.mrf.mxu0
  %v364 = vadd.f32 %v335, %v363
  %v365 = vpop.f32.mrf.mxu0
  %v366 = vadd.f32 %v337, %v365
  %367 = vmatmul.bf16.gmra.mxu0 %v91
  %v368 = vpop.f32.mrf.mxu0
  %v369 = vadd.f32 %v340, %v368
  %v370 = vpop.f32.mrf.mxu0
  %v371 = vadd.f32 %v342, %v370
  %372 = vdwg.mxu0
  %v373 = vld [vmem:[%s0 + $0x48] sm:$0xf]
  %v374 = vld [vmem:[%s0 + $0x4c] sm:$0xf]
  %v375 = vld [vmem:[%s0 + $0x50] sm:$0xf]
  %v376 = vld [vmem:[%s0 + $0x54] sm:$0xf]
  %v377 = vld [vmem:[%s0 + $0x58] sm:$0xf]
  %v378 = vld [vmem:[%s0 + $0x5c] sm:$0xf]
  %v379 = vld [vmem:[%s0 + $0x60] sm:$0xf]
  %v380 = vld [vmem:[%s0 + $0x64] sm:$0xf]
  %v389 = vunpack.c.l.b16 %v373
  %v390 = vunpack.c.l.b16 %v374
  %v391 = vunpack.c.l.b16 %v375
  %v392 = vunpack.c.l.b16 %v376
  %v393 = vunpack.c.l.b16 %v377
  %v394 = vunpack.c.l.b16 %v378
  %v395 = vunpack.c.l.b16 %v379
  %v396 = vunpack.c.l.b16 %v380
  %v397 = vpack.c.b16 %v390, %v389
  %v398 = vpack.c.b16 %v392, %v391
  %v399 = vpack.c.b16 %v394, %v393
  %v400 = vpack.c.b16 %v396, %v395
  %v402 = vsel %vm80, %v397, 0
  %v405 = vsel %vm80, %v398, 0
  %v408 = vsel %vm80, %v399, 0
  %v411 = vsel %vm80, %v400, 0
  %413 = vmatpush.bf16.msra.mxu0 0
  %414 = vmatpush.bf16.msra.mxu0 0
  %415 = vmatpush.bf16.msra.mxu0 0
  %416 = vmatpush.bf16.msra.mxu0 0
  %417 = vmatpush.bf16.msra.mxu0 0
  %418 = vmatpush.bf16.msra.mxu0 0
  %419 = vmatpush.bf16.msra.mxu0 0
  %420 = vmatpush.bf16.msra.mxu0 %v224
  %421 = vmatmul.bf16.gmra.mxu0 %v402
  %v422 = vpop.f32.mrf.mxu0
  %v423 = vadd.f32 0.0, %v422
  %v424 = vpop.f32.mrf.mxu0
  %v425 = vadd.f32 0.0, %v424
  %426 = vmatmul.bf16.gmra.mxu0 %v405
  %v427 = vpop.f32.mrf.mxu0
  %v428 = vadd.f32 0.0, %v427
  %v429 = vpop.f32.mrf.mxu0
  %v430 = vadd.f32 0.0, %v429
  %431 = vmatmul.bf16.gmra.mxu0 %v408
  %v432 = vpop.f32.mrf.mxu0
  %v433 = vadd.f32 0.0, %v432
  %v434 = vpop.f32.mrf.mxu0
  %v435 = vadd.f32 0.0, %v434
  %436 = vmatmul.bf16.gmra.mxu0 %v411
  %v437 = vpop.f32.mrf.mxu0
  %v438 = vadd.f32 0.0, %v437
  %v439 = vpop.f32.mrf.mxu0
  %v440 = vadd.f32 0.0, %v439
  %441 = vdwg.mxu0
  %v442 = vadd.f32 %v354, %v423
  %v443 = vadd.f32 %v356, %v425
  %v444 = vadd.f32 %v359, %v428
  %v445 = vadd.f32 %v361, %v430
  %v446 = vadd.f32 %v364, %v433
  %v447 = vadd.f32 %v366, %v435
  %v448 = vadd.f32 %v369, %v438
  %v449 = vadd.f32 %v371, %v440
  %458 = vrot.lane.b32.xlu0 %v442, 96
  %v459 = vpop.permute.xlu0 %458
  %460 = vrot.lane.b32.xlu0 %v443, 96
  %v461 = vpop.permute.xlu0 %460
  %462 = vrot.lane.b32.xlu0 %v444, 96
  %v463 = vpop.permute.xlu0 %462
  %464 = vrot.lane.b32.xlu0 %v445, 96
  %v465 = vpop.permute.xlu0 %464
  %466 = vrot.lane.b32.xlu0 %v446, 96
  %v467 = vpop.permute.xlu0 %466
  %468 = vrot.lane.b32.xlu0 %v447, 96
  %v469 = vpop.permute.xlu0 %468
  %470 = vrot.lane.b32.xlu0 %v448, 96
  %v471 = vpop.permute.xlu0 %470
  %472 = vrot.lane.b32.xlu0 %v449, 96
  %v473 = vpop.permute.xlu0 %472
  %v482 = vmax.f32 %v442, %v459
  %v483 = vmax.f32 %v443, %v461
  %v484 = vmax.f32 %v444, %v463
  %v485 = vmax.f32 %v445, %v465
  %v486 = vmax.f32 %v446, %v467
  %v487 = vmax.f32 %v447, %v469
  %v488 = vmax.f32 %v448, %v471
  %v489 = vmax.f32 %v449, %v473
  %v490 = vmax.f32 %v307, %v482
  %v491 = vmax.f32 %v308, %v483
  %v492 = vmax.f32 %v309, %v484
  %v493 = vmax.f32 %v310, %v485
  %v494 = vmax.f32 %v311, %v486
  %v495 = vmax.f32 %v312, %v487
  %v496 = vmax.f32 %v313, %v488
  %v497 = vmax.f32 %v314, %v489
  %498 = vmatpush.bf16.msra.mxu0 0
  %499 = vmatpush.bf16.msra.mxu0 0
  %500 = vmatpush.bf16.msra.mxu0 0
  %501 = vmatpush.bf16.msra.mxu0 0
  %502 = vmatpush.bf16.msra.mxu0 0
  %503 = vmatpush.bf16.msra.mxu0 0
  %504 = vmatpush.bf16.msra.mxu0 0
  %505 = vmatpush.bf16.msra.mxu0 %v78
  %506 = vmatmul.bf16.gmra.mxu0 %v402
  %v507 = vpop.f32.mrf.mxu0
  %v508 = vadd.f32 0.0, %v507
  %v509 = vpop.f32.mrf.mxu0
  %v510 = vadd.f32 0.0, %v509
  %511 = vmatmul.bf16.gmra.mxu0 %v405
  %v512 = vpop.f32.mrf.mxu0
  %v513 = vadd.f32 0.0, %v512
  %v514 = vpop.f32.mrf.mxu0
  %v515 = vadd.f32 0.0, %v514
  %516 = vmatmul.bf16.gmra.mxu0 %v408
  %v517 = vpop.f32.mrf.mxu0
  %v518 = vadd.f32 0.0, %v517
  %v519 = vpop.f32.mrf.mxu0
  %v520 = vadd.f32 0.0, %v519
  %521 = vmatmul.bf16.gmra.mxu0 %v411
  %v522 = vpop.f32.mrf.mxu0
  %v523 = vadd.f32 0.0, %v522
  %v524 = vpop.f32.mrf.mxu0
  %v525 = vadd.f32 0.0, %v524
  %526 = vdwg.mxu0
  %527 = vmatpush.bf16.msra.mxu0 0
  %528 = vmatpush.bf16.msra.mxu0 0
  %529 = vmatpush.bf16.msra.mxu0 0
  %530 = vmatpush.bf16.msra.mxu0 0
  %531 = vmatpush.bf16.msra.mxu0 0
  %532 = vmatpush.bf16.msra.mxu0 0
  %533 = vmatpush.bf16.msra.mxu0 0
  %534 = vmatpush.bf16.msra.mxu0 %v146
  %535 = vmatmul.bf16.gmra.mxu0 %v227
  %v536 = vpop.f32.mrf.mxu0
  %v537 = vadd.f32 %v508, %v536
  %v538 = vpop.f32.mrf.mxu0
  %v539 = vadd.f32 %v510, %v538
  %540 = vmatmul.bf16.gmra.mxu0 %v230
  %v541 = vpop.f32.mrf.mxu0
  %v542 = vadd.f32 %v513, %v541
  %v543 = vpop.f32.mrf.mxu0
  %v544 = vadd.f32 %v515, %v543
  %545 = vmatmul.bf16.gmra.mxu0 %v233
  %v546 = vpop.f32.mrf.mxu0
  %v547 = vadd.f32 %v518, %v546
  %v548 = vpop.f32.mrf.mxu0
  %v549 = vadd.f32 %v520, %v548
  %550 = vmatmul.bf16.gmra.mxu0 %v236
  %v551 = vpop.f32.mrf.mxu0
  %v552 = vadd.f32 %v523, %v551
  %v553 = vpop.f32.mrf.mxu0
  %v554 = vadd.f32 %v525, %v553
  %555 = vdwg.mxu0
  %v556 = vld [vmem:[%s0 + $0x70] sm:$0xf]
  %v557 = vld [vmem:[%s0 + $0x74] sm:$0xf]
  %v558 = vld [vmem:[%s0 + $0x78] sm:$0xf]
  %v559 = vld [vmem:[%s0 + $0x7c] sm:$0xf]
  %v560 = vld [vmem:[%s0 + $0x80] sm:$0xf]
  %v561 = vld [vmem:[%s0 + $0x84] sm:$0xf]
  %v562 = vld [vmem:[%s0 + $0x88] sm:$0xf]
  %v563 = vld [vmem:[%s0 + $0x8c] sm:$0xf]
  %v572 = vunpack.c.l.b16 %v556
  %v573 = vunpack.c.l.b16 %v557
  %v574 = vunpack.c.l.b16 %v558
  %v575 = vunpack.c.l.b16 %v559
  %v576 = vunpack.c.l.b16 %v560
  %v577 = vunpack.c.l.b16 %v561
  %v578 = vunpack.c.l.b16 %v562
  %v579 = vunpack.c.l.b16 %v563
  %v580 = vpack.c.b16 %v573, %v572
  %v581 = vpack.c.b16 %v575, %v574
  %v582 = vpack.c.b16 %v577, %v576
  %v583 = vpack.c.b16 %v579, %v578
  %v585 = vsel %vm80, %v580, 0
  %v588 = vsel %vm80, %v581, 0
  %v591 = vsel %vm80, %v582, 0
  %v594 = vsel %vm80, %v583, 0
  %596 = vmatpush.bf16.msra.mxu0 0
  %597 = vmatpush.bf16.msra.mxu0 0
  %598 = vmatpush.bf16.msra.mxu0 0
  %599 = vmatpush.bf16.msra.mxu0 0
  %600 = vmatpush.bf16.msra.mxu0 0
  %601 = vmatpush.bf16.msra.mxu0 0
  %602 = vmatpush.bf16.msra.mxu0 0
  %603 = vmatpush.bf16.msra.mxu0 %v224
  %604 = vmatmul.bf16.gmra.mxu0 %v585
  %v605 = vpop.f32.mrf.mxu0
  %v606 = vadd.f32 0.0, %v605
  %v607 = vpop.f32.mrf.mxu0
  %v608 = vadd.f32 0.0, %v607
  %609 = vmatmul.bf16.gmra.mxu0 %v588
  %v610 = vpop.f32.mrf.mxu0
  %v611 = vadd.f32 0.0, %v610
  %v612 = vpop.f32.mrf.mxu0
  %v613 = vadd.f32 0.0, %v612
  %614 = vmatmul.bf16.gmra.mxu0 %v591
  %v615 = vpop.f32.mrf.mxu0
  %v616 = vadd.f32 0.0, %v615
  %v617 = vpop.f32.mrf.mxu0
  %v618 = vadd.f32 0.0, %v617
  %619 = vmatmul.bf16.gmra.mxu0 %v594
  %v620 = vpop.f32.mrf.mxu0
  %v621 = vadd.f32 0.0, %v620
  %v622 = vpop.f32.mrf.mxu0
  %v623 = vadd.f32 0.0, %v622
  %624 = vdwg.mxu0
  %v625 = vadd.f32 %v537, %v606
  %v626 = vadd.f32 %v539, %v608
  %v627 = vadd.f32 %v542, %v611
  %v628 = vadd.f32 %v544, %v613
  %v629 = vadd.f32 %v547, %v616
  %v630 = vadd.f32 %v549, %v618
  %v631 = vadd.f32 %v552, %v621
  %v632 = vadd.f32 %v554, %v623
  %641 = vrot.lane.b32.xlu0 %v625, 96
  %v642 = vpop.permute.xlu0 %641
  %643 = vrot.lane.b32.xlu0 %v626, 96
  %v644 = vpop.permute.xlu0 %643
  %645 = vrot.lane.b32.xlu0 %v627, 96
  %v646 = vpop.permute.xlu0 %645
  %647 = vrot.lane.b32.xlu0 %v628, 96
  %v648 = vpop.permute.xlu0 %647
  %649 = vrot.lane.b32.xlu0 %v629, 96
  %v650 = vpop.permute.xlu0 %649
  %651 = vrot.lane.b32.xlu0 %v630, 96
  %v652 = vpop.permute.xlu0 %651
  %653 = vrot.lane.b32.xlu0 %v631, 96
  %v654 = vpop.permute.xlu0 %653
  %655 = vrot.lane.b32.xlu0 %v632, 96
  %v656 = vpop.permute.xlu0 %655
  %v665 = vmax.f32 %v625, %v642
  %v666 = vmax.f32 %v626, %v644
  %v667 = vmax.f32 %v627, %v646
  %v668 = vmax.f32 %v628, %v648
  %v669 = vmax.f32 %v629, %v650
  %v670 = vmax.f32 %v630, %v652
  %v671 = vmax.f32 %v631, %v654
  %v672 = vmax.f32 %v632, %v656
  %673 = vmatpush.bf16.msra.mxu0 0
  %674 = vmatpush.bf16.msra.mxu0 0
  %675 = vmatpush.bf16.msra.mxu0 0
  %676 = vmatpush.bf16.msra.mxu0 0
  %677 = vmatpush.bf16.msra.mxu0 0
  %678 = vmatpush.bf16.msra.mxu0 0
  %679 = vmatpush.bf16.msra.mxu0 0
  %680 = vmatpush.bf16.msra.mxu0 %v78
  %681 = vmatmul.bf16.gmra.mxu0 %v585
  %v682 = vpop.f32.mrf.mxu0
  %v683 = vadd.f32 0.0, %v682
  %v684 = vpop.f32.mrf.mxu0
  %v685 = vadd.f32 0.0, %v684
  %686 = vmatmul.bf16.gmra.mxu0 %v588
  %v687 = vpop.f32.mrf.mxu0
  %v688 = vadd.f32 0.0, %v687
  %v689 = vpop.f32.mrf.mxu0
  %v690 = vadd.f32 0.0, %v689
  %691 = vmatmul.bf16.gmra.mxu0 %v591
  %v692 = vpop.f32.mrf.mxu0
  %v693 = vadd.f32 0.0, %v692
  %v694 = vpop.f32.mrf.mxu0
  %v695 = vadd.f32 0.0, %v694
  %696 = vmatmul.bf16.gmra.mxu0 %v594
  %v697 = vpop.f32.mrf.mxu0
  %v698 = vadd.f32 0.0, %v697
  %v699 = vpop.f32.mrf.mxu0
  %v700 = vadd.f32 0.0, %v699
  %701 = vdwg.mxu0
  %702 = vmatpush.bf16.msra.mxu0 0
  %703 = vmatpush.bf16.msra.mxu0 0
  %704 = vmatpush.bf16.msra.mxu0 0
  %705 = vmatpush.bf16.msra.mxu0 0
  %706 = vmatpush.bf16.msra.mxu0 0
  %707 = vmatpush.bf16.msra.mxu0 0
  %708 = vmatpush.bf16.msra.mxu0 0
  %709 = vmatpush.bf16.msra.mxu0 %v146
  %710 = vmatmul.bf16.gmra.mxu0 %v402
  %v711 = vpop.f32.mrf.mxu0
  %v712 = vadd.f32 %v683, %v711
  %v713 = vpop.f32.mrf.mxu0
  %v714 = vadd.f32 %v685, %v713
  %715 = vmatmul.bf16.gmra.mxu0 %v405
  %v716 = vpop.f32.mrf.mxu0
  %v717 = vadd.f32 %v688, %v716
  %v718 = vpop.f32.mrf.mxu0
  %v719 = vadd.f32 %v690, %v718
  %720 = vmatmul.bf16.gmra.mxu0 %v408
  %v721 = vpop.f32.mrf.mxu0
  %v722 = vadd.f32 %v693, %v721
  %v723 = vpop.f32.mrf.mxu0
  %v724 = vadd.f32 %v695, %v723
  %725 = vmatmul.bf16.gmra.mxu0 %v411
  %v726 = vpop.f32.mrf.mxu0
  %v727 = vadd.f32 %v698, %v726
  %v728 = vpop.f32.mrf.mxu0
  %v729 = vadd.f32 %v700, %v728
  %730 = vdwg.mxu0
  %v731 = vld [vmem:[%s0 + $0x8] sm:$0xf]
  %v732 = vld [vmem:[%s0 + $0xc] sm:$0xf]
  %v733 = vld [vmem:[%s0 + $0x10] sm:$0xf]
  %v734 = vld [vmem:[%s0 + $0x14] sm:$0xf]
  %v735 = vld [vmem:[%s0 + $0x18] sm:$0xf]
  %v736 = vld [vmem:[%s0 + $0x1c] sm:$0xf]
  %v737 = vld [vmem:[%s0 + $0x20] sm:$0xf]
  %v738 = vld [vmem:[%s0 + $0x24] sm:$0xf]
  %v747 = vunpack.c.l.b16 %v731
  %v748 = vunpack.c.l.b16 %v732
  %v749 = vunpack.c.l.b16 %v733
  %v750 = vunpack.c.l.b16 %v734
  %v751 = vunpack.c.l.b16 %v735
  %v752 = vunpack.c.l.b16 %v736
  %v753 = vunpack.c.l.b16 %v737
  %v754 = vunpack.c.l.b16 %v738
  %v755 = vpack.c.b16 %v748, %v747
  %v756 = vpack.c.b16 %v750, %v749
  %v757 = vpack.c.b16 %v752, %v751
  %v758 = vpack.c.b16 %v754, %v753
  %v760 = vsel %vm80, %v755, 0
  %v763 = vsel %vm80, %v756, 0
  %v766 = vsel %vm80, %v757, 0
  %v769 = vsel %vm80, %v758, 0
  %771 = vmatpush.bf16.msra.mxu0 0
  %772 = vmatpush.bf16.msra.mxu0 0
  %773 = vmatpush.bf16.msra.mxu0 0
  %774 = vmatpush.bf16.msra.mxu0 0
  %775 = vmatpush.bf16.msra.mxu0 0
  %776 = vmatpush.bf16.msra.mxu0 0
  %777 = vmatpush.bf16.msra.mxu0 0
  %778 = vmatpush.bf16.msra.mxu0 %v224
  %779 = vmatmul.bf16.gmra.mxu0 %v760
  %v780 = vpop.f32.mrf.mxu0
  %v781 = vadd.f32 0.0, %v780
  %v782 = vpop.f32.mrf.mxu0
  %v783 = vadd.f32 0.0, %v782
  %784 = vmatmul.bf16.gmra.mxu0 %v763
  %v785 = vpop.f32.mrf.mxu0
  %v786 = vadd.f32 0.0, %v785
  %v787 = vpop.f32.mrf.mxu0
  %v788 = vadd.f32 0.0, %v787
  %789 = vmatmul.bf16.gmra.mxu0 %v766
  %v790 = vpop.f32.mrf.mxu0
  %v791 = vadd.f32 0.0, %v790
  %v792 = vpop.f32.mrf.mxu0
  %v793 = vadd.f32 0.0, %v792
  %794 = vmatmul.bf16.gmra.mxu0 %v769
  %v795 = vpop.f32.mrf.mxu0
  %v796 = vadd.f32 0.0, %v795
  %v797 = vpop.f32.mrf.mxu0
  %v798 = vadd.f32 0.0, %v797
  %799 = vdwg.mxu0
  %v800 = vadd.f32 %v712, %v781
  %v801 = vadd.f32 %v714, %v783
  %v802 = vadd.f32 %v717, %v786
  %v803 = vadd.f32 %v719, %v788
  %v804 = vadd.f32 %v722, %v791
  %v805 = vadd.f32 %v724, %v793
  %v806 = vadd.f32 %v727, %v796
  %v807 = vadd.f32 %v729, %v798
  %816 = vrot.lane.b32.xlu0 %v800, 96
  %v817 = vpop.permute.xlu0 %816
  %818 = vrot.lane.b32.xlu0 %v801, 96
  %v819 = vpop.permute.xlu0 %818
  %820 = vrot.lane.b32.xlu0 %v802, 96
  %v821 = vpop.permute.xlu0 %820
  %822 = vrot.lane.b32.xlu0 %v803, 96
  %v823 = vpop.permute.xlu0 %822
  %824 = vrot.lane.b32.xlu0 %v804, 96
  %v825 = vpop.permute.xlu0 %824
  %826 = vrot.lane.b32.xlu0 %v805, 96
  %v827 = vpop.permute.xlu0 %826
  %828 = vrot.lane.b32.xlu0 %v806, 96
  %v829 = vpop.permute.xlu0 %828
  %830 = vrot.lane.b32.xlu0 %v807, 96
  %v831 = vpop.permute.xlu0 %830
  %v840 = vmax.f32 %v800, %v817
  %v841 = vmax.f32 %v801, %v819
  %v842 = vmax.f32 %v802, %v821
  %v843 = vmax.f32 %v803, %v823
  %v844 = vmax.f32 %v804, %v825
  %v845 = vmax.f32 %v805, %v827
  %v846 = vmax.f32 %v806, %v829
  %v847 = vmax.f32 %v807, %v831
  %v848 = vmax.f32 %v665, %v840
  %v849 = vmax.f32 %v666, %v841
  %v850 = vmax.f32 %v667, %v842
  %v851 = vmax.f32 %v668, %v843
  %v852 = vmax.f32 %v669, %v844
  %v853 = vmax.f32 %v670, %v845
  %v854 = vmax.f32 %v671, %v846
  %v855 = vmax.f32 %v672, %v847
  %v856 = vld [vmem:[%s2] sm:$0x1]
  %v858 = vperm.slane %v856, 0
  %v860 = vadd.f32 %v490, %v858
  %v861 = vadd.f32 %v491, %v858
  %v862 = vadd.f32 %v492, %v858
  %v863 = vadd.f32 %v493, %v858
  %v864 = vadd.f32 %v494, %v858
  %v865 = vadd.f32 %v495, %v858
  %v866 = vadd.f32 %v496, %v858
  %v867 = vadd.f32 %v497, %v858
  %v868 = vmax.f32 %v860, 0.0
  %v869 = vmax.f32 %v861, 0.0
  %v870 = vmax.f32 %v862, 0.0
  %v871 = vmax.f32 %v863, 0.0
  %v872 = vmax.f32 %v864, 0.0
  %v873 = vmax.f32 %v865, 0.0
  %v874 = vmax.f32 %v866, 0.0
  %v875 = vmax.f32 %v867, 0.0
  %v876 = vadd.f32 %v848, %v858
  %v877 = vadd.f32 %v849, %v858
  %v878 = vadd.f32 %v850, %v858
  %v879 = vadd.f32 %v851, %v858
  %v880 = vadd.f32 %v852, %v858
  %v881 = vadd.f32 %v853, %v858
  %v882 = vadd.f32 %v854, %v858
  %v883 = vadd.f32 %v855, %v858
  %v884 = vmax.f32 %v876, 0.0
  %v885 = vmax.f32 %v877, 0.0
  %v886 = vmax.f32 %v878, 0.0
  %v887 = vmax.f32 %v879, 0.0
  %v888 = vmax.f32 %v880, 0.0
  %v889 = vmax.f32 %v881, 0.0
  %v890 = vmax.f32 %v882, 0.0
  %v891 = vmax.f32 %v883, 0.0
  %v892 = vpack.c.bf16 %v868, %v868
  %v893 = vpack.c.bf16 %v869, %v869
  %v894 = vpack.c.bf16 %v870, %v870
  %v895 = vpack.c.bf16 %v871, %v871
  %v896 = vpack.c.bf16 %v872, %v872
  %v897 = vpack.c.bf16 %v873, %v873
  %v898 = vpack.c.bf16 %v874, %v874
  %v899 = vpack.c.bf16 %v875, %v875
  %vm900 = vcmask 257024
  %901 = vst.msk [vmem:[#allocation2] sm:$0xf] %vm900, %v892
  %902 = vst.msk [vmem:[#allocation2 + $0x4] sm:$0xf] %vm900, %v893
  %903 = vst.msk [vmem:[#allocation2 + $0x8] sm:$0xf] %vm900, %v894
  %904 = vst.msk [vmem:[#allocation2 + $0xc] sm:$0xf] %vm900, %v895
  %905 = vst.msk [vmem:[#allocation2 + $0x10] sm:$0xf] %vm900, %v896
  %906 = vst.msk [vmem:[#allocation2 + $0x14] sm:$0xf] %vm900, %v897
  %907 = vst.msk [vmem:[#allocation2 + $0x18] sm:$0xf] %vm900, %v898
  %908 = vst.msk [vmem:[#allocation2 + $0x1c] sm:$0xf] %vm900, %v899
  %909 = vst.msk [vmem:[#allocation2 + $0x20] sm:$0xf] %vm900, 0
  %910 = vst.msk [vmem:[#allocation2 + $0x24] sm:$0xf] %vm900, 0
  %v911 = vpack.c.bf16 %v884, %v884
  %v912 = vpack.c.bf16 %v885, %v885
  %v913 = vpack.c.bf16 %v886, %v886
  %v914 = vpack.c.bf16 %v887, %v887
  %v915 = vpack.c.bf16 %v888, %v888
  %v916 = vpack.c.bf16 %v889, %v889
  %v917 = vpack.c.bf16 %v890, %v890
  %v918 = vpack.c.bf16 %v891, %v891
  %919 = vst.msk [vmem:[#allocation2 + $0x28] sm:$0xf] %vm900, %v911
  %920 = vst.msk [vmem:[#allocation2 + $0x2c] sm:$0xf] %vm900, %v912
  %921 = vst.msk [vmem:[#allocation2 + $0x30] sm:$0xf] %vm900, %v913
  %922 = vst.msk [vmem:[#allocation2 + $0x34] sm:$0xf] %vm900, %v914
  %923 = vst.msk [vmem:[#allocation2 + $0x38] sm:$0xf] %vm900, %v915
  %924 = vst.msk [vmem:[#allocation2 + $0x3c] sm:$0xf] %vm900, %v916
  %925 = vst.msk [vmem:[#allocation2 + $0x40] sm:$0xf] %vm900, %v917
  %926 = vst.msk [vmem:[#allocation2 + $0x44] sm:$0xf] %vm900, %v918
  %v927 = vld [vmem:[#allocation2 + $0x20] sm:$0xf]
  %v928 = vld [vmem:[#allocation2 + $0x24] sm:$0xf]
  %v929 = vld [vmem:[#allocation2 + $0x28] sm:$0xf]
  %v930 = vld [vmem:[#allocation2 + $0x2c] sm:$0xf]
  %v931 = vld [vmem:[#allocation2 + $0x30] sm:$0xf]
  %v932 = vld [vmem:[#allocation2 + $0x34] sm:$0xf]
  %v933 = vld [vmem:[#allocation2 + $0x38] sm:$0xf]
  %v934 = vld [vmem:[#allocation2 + $0x3c] sm:$0xf]
  %v935 = vld [vmem:[%s3] sm:$0xf]
  %v936 = vld [vmem:[%s3 + $0x4] sm:$0xf]
  %v937 = vld [vmem:[%s3 + $0x8] sm:$0xf]
  %v938 = vld [vmem:[%s3 + $0xc] sm:$0xf]
  %v939 = vld [vmem:[#allocation2] sm:$0xf]
  %v940 = vld [vmem:[#allocation2 + $0x4] sm:$0xf]
  %v941 = vld [vmem:[#allocation2 + $0x8] sm:$0xf]
  %v942 = vld [vmem:[#allocation2 + $0xc] sm:$0xf]
  %v943 = vld [vmem:[#allocation2 + $0x10] sm:$0xf]
  %v944 = vld [vmem:[#allocation2 + $0x14] sm:$0xf]
  %v945 = vld [vmem:[#allocation2 + $0x18] sm:$0xf]
  %v946 = vld [vmem:[#allocation2 + $0x1c] sm:$0xf]
  %s947 = scalar_lea.vmem %s3, 16
  %v948 = vld [vmem:[%s947] sm:$0xf]
  %v949 = vld [vmem:[%s947 + $0x4] sm:$0xf]
  %v950 = vld [vmem:[%s947 + $0x8] sm:$0xf]
  %v951 = vld [vmem:[%s947 + $0xc] sm:$0xf]
  %v960 = vunpack.c.l.b16 %v939
  %v961 = vunpack.c.l.b16 %v940
  %v962 = vunpack.c.l.b16 %v941
  %v963 = vunpack.c.l.b16 %v942
  %v964 = vunpack.c.l.b16 %v943
  %v965 = vunpack.c.l.b16 %v944
  %v966 = vunpack.c.l.b16 %v945
  %v967 = vunpack.c.l.b16 %v946
  %v968 = vpack.c.b16 %v961, %v960
  %v969 = vpack.c.b16 %v963, %v962
  %v970 = vpack.c.b16 %v965, %v964
  %v971 = vpack.c.b16 %v967, %v966
  %v976 = vunpack.c.l.b16 %v948
  %v977 = vunpack.c.l.b16 %v949
  %v978 = vunpack.c.l.b16 %v950
  %v979 = vunpack.c.l.b16 %v951
  %v980 = vpack.c.b16 %v977, %v976
  %v981 = vpack.c.b16 %v979, %v978
  %vm984 = vcmask 261120
  %v986 = vsel %vm984, %v968, 0
  %v989 = vsel %vm984, %v969, 0
  %v992 = vsel %vm984, %v970, 0
  %v995 = vsel %vm984, %v971, 0
  %997 = vmatpush.bf16.msra.mxu0 0
  %998 = vmatpush.bf16.msra.mxu0 0
  %999 = vmatpush.bf16.msra.mxu0 0
  %1000 = vmatpush.bf16.msra.mxu0 0
  %1001 = vmatpush.bf16.msra.mxu0 0
  %1002 = vmatpush.bf16.msra.mxu0 0
  %1003 = vmatpush.bf16.msra.mxu0 %v981
  %1004 = vmatpush.bf16.msra.mxu0 %v980
  %1005 = vmatmul.bf16.gmra.mxu0 %v986
  %v1006 = vpop.f32.mrf.mxu0
  %v1007 = vadd.f32 0.0, %v1006
  %v1008 = vpop.f32.mrf.mxu0
  %v1009 = vadd.f32 0.0, %v1008
  %1010 = vmatmul.bf16.gmra.mxu0 %v989
  %v1011 = vpop.f32.mrf.mxu0
  %v1012 = vadd.f32 0.0, %v1011
  %v1013 = vpop.f32.mrf.mxu0
  %v1014 = vadd.f32 0.0, %v1013
  %1015 = vmatmul.bf16.gmra.mxu0 %v992
  %v1016 = vpop.f32.mrf.mxu0
  %v1017 = vadd.f32 0.0, %v1016
  %v1018 = vpop.f32.mrf.mxu0
  %v1019 = vadd.f32 0.0, %v1018
  %1020 = vmatmul.bf16.gmra.mxu0 %v995
  %v1021 = vpop.f32.mrf.mxu0
  %v1022 = vadd.f32 0.0, %v1021
  %v1023 = vpop.f32.mrf.mxu0
  %v1024 = vadd.f32 0.0, %v1023
  %1025 = vdwg.mxu0
  %v1034 = vunpack.c.l.b16 %v927
  %v1035 = vunpack.c.l.b16 %v928
  %v1036 = vunpack.c.l.b16 %v929
  %v1037 = vunpack.c.l.b16 %v930
  %v1038 = vunpack.c.l.b16 %v931
  %v1039 = vunpack.c.l.b16 %v932
  %v1040 = vunpack.c.l.b16 %v933
  %v1041 = vunpack.c.l.b16 %v934
  %v1042 = vpack.c.b16 %v1035, %v1034
  %v1043 = vpack.c.b16 %v1037, %v1036
  %v1044 = vpack.c.b16 %v1039, %v1038
  %v1045 = vpack.c.b16 %v1041, %v1040
  %v1050 = vunpack.c.l.b16 %v935
  %v1051 = vunpack.c.l.b16 %v936
  %v1052 = vunpack.c.l.b16 %v937
  %v1053 = vunpack.c.l.b16 %v938
  %v1054 = vpack.c.b16 %v1051, %v1050
  %v1055 = vpack.c.b16 %v1053, %v1052
  %v1059 = vsel %vm984, %v1042, 0
  %v1062 = vsel %vm984, %v1043, 0
  %v1065 = vsel %vm984, %v1044, 0
  %v1068 = vsel %vm984, %v1045, 0
  %1070 = vmatpush.bf16.msra.mxu0 0
  %1071 = vmatpush.bf16.msra.mxu0 0
  %1072 = vmatpush.bf16.msra.mxu0 0
  %1073 = vmatpush.bf16.msra.mxu0 0
  %1074 = vmatpush.bf16.msra.mxu0 0
  %1075 = vmatpush.bf16.msra.mxu0 0
  %1076 = vmatpush.bf16.msra.mxu0 %v1055
  %1077 = vmatpush.bf16.msra.mxu0 %v1054
  %1078 = vmatmul.bf16.gmra.mxu0 %v1059
  %v1079 = vpop.f32.mrf.mxu0
  %v1080 = vadd.f32 %v1007, %v1079
  %v1081 = vpop.f32.mrf.mxu0
  %v1082 = vadd.f32 %v1009, %v1081
  %1083 = vmatmul.bf16.gmra.mxu0 %v1062
  %v1084 = vpop.f32.mrf.mxu0
  %v1085 = vadd.f32 %v1012, %v1084
  %v1086 = vpop.f32.mrf.mxu0
  %v1087 = vadd.f32 %v1014, %v1086
  %1088 = vmatmul.bf16.gmra.mxu0 %v1065
  %v1089 = vpop.f32.mrf.mxu0
  %v1090 = vadd.f32 %v1017, %v1089
  %v1091 = vpop.f32.mrf.mxu0
  %v1092 = vadd.f32 %v1019, %v1091
  %1093 = vmatmul.bf16.gmra.mxu0 %v1068
  %v1094 = vpop.f32.mrf.mxu0
  %v1095 = vadd.f32 %v1022, %v1094
  %v1096 = vpop.f32.mrf.mxu0
  %v1097 = vadd.f32 %v1024, %v1096
  %1098 = vdwg.mxu0
  %v1099 = vld [vmem:[#allocation2 + $0x28] sm:$0xf]
  %v1100 = vld [vmem:[#allocation2 + $0x2c] sm:$0xf]
  %v1101 = vld [vmem:[#allocation2 + $0x30] sm:$0xf]
  %v1102 = vld [vmem:[#allocation2 + $0x34] sm:$0xf]
  %v1103 = vld [vmem:[#allocation2 + $0x38] sm:$0xf]
  %v1104 = vld [vmem:[#allocation2 + $0x3c] sm:$0xf]
  %v1105 = vld [vmem:[#allocation2 + $0x40] sm:$0xf]
  %v1106 = vld [vmem:[#allocation2 + $0x44] sm:$0xf]
  %s1107 = scalar_lea.vmem %s3, 32
  %v1108 = vld [vmem:[%s1107] sm:$0xf]
  %v1109 = vld [vmem:[%s1107 + $0x4] sm:$0xf]
  %v1110 = vld [vmem:[%s1107 + $0x8] sm:$0xf]
  %v1111 = vld [vmem:[%s1107 + $0xc] sm:$0xf]
  %v1120 = vunpack.c.l.b16 %v1099
  %v1121 = vunpack.c.l.b16 %v1100
  %v1122 = vunpack.c.l.b16 %v1101
  %v1123 = vunpack.c.l.b16 %v1102
  %v1124 = vunpack.c.l.b16 %v1103
  %v1125 = vunpack.c.l.b16 %v1104
  %v1126 = vunpack.c.l.b16 %v1105
  %v1127 = vunpack.c.l.b16 %v1106
  %v1128 = vpack.c.b16 %v1121, %v1120
  %v1129 = vpack.c.b16 %v1123, %v1122
  %v1130 = vpack.c.b16 %v1125, %v1124
  %v1131 = vpack.c.b16 %v1127, %v1126
  %v1136 = vunpack.c.l.b16 %v1108
  %v1137 = vunpack.c.l.b16 %v1109
  %v1138 = vunpack.c.l.b16 %v1110
  %v1139 = vunpack.c.l.b16 %v1111
  %v1140 = vpack.c.b16 %v1137, %v1136
  %v1141 = vpack.c.b16 %v1139, %v1138
  %v1145 = vsel %vm984, %v1128, 0
  %v1148 = vsel %vm984, %v1129, 0
  %v1151 = vsel %vm984, %v1130, 0
  %v1154 = vsel %vm984, %v1131, 0
  %1156 = vmatpush.bf16.msra.mxu0 0
  %1157 = vmatpush.bf16.msra.mxu0 0
  %1158 = vmatpush.bf16.msra.mxu0 0
  %1159 = vmatpush.bf16.msra.mxu0 0
  %1160 = vmatpush.bf16.msra.mxu0 0
  %1161 = vmatpush.bf16.msra.mxu0 0
  %1162 = vmatpush.bf16.msra.mxu0 %v1141
  %1163 = vmatpush.bf16.msra.mxu0 %v1140
  %1164 = vmatmul.bf16.gmra.mxu0 %v1145
  %v1165 = vpop.f32.mrf.mxu0
  %v1166 = vadd.f32 0.0, %v1165
  %v1167 = vpop.f32.mrf.mxu0
  %v1168 = vadd.f32 0.0, %v1167
  %1169 = vmatmul.bf16.gmra.mxu0 %v1148
  %v1170 = vpop.f32.mrf.mxu0
  %v1171 = vadd.f32 0.0, %v1170
  %v1172 = vpop.f32.mrf.mxu0
  %v1173 = vadd.f32 0.0, %v1172
  %1174 = vmatmul.bf16.gmra.mxu0 %v1151
  %v1175 = vpop.f32.mrf.mxu0
  %v1176 = vadd.f32 0.0, %v1175
  %v1177 = vpop.f32.mrf.mxu0
  %v1178 = vadd.f32 0.0, %v1177
  %1179 = vmatmul.bf16.gmra.mxu0 %v1154
  %v1180 = vpop.f32.mrf.mxu0
  %v1181 = vadd.f32 0.0, %v1180
  %v1182 = vpop.f32.mrf.mxu0
  %v1183 = vadd.f32 0.0, %v1182
  %1184 = vdwg.mxu0
  %v1185 = vadd.f32 %v1080, %v1166
  %v1186 = vadd.f32 %v1082, %v1168
  %v1187 = vadd.f32 %v1085, %v1171
  %v1188 = vadd.f32 %v1087, %v1173
  %v1189 = vadd.f32 %v1090, %v1176
  %v1190 = vadd.f32 %v1092, %v1178
  %v1191 = vadd.f32 %v1095, %v1181
  %v1192 = vadd.f32 %v1097, %v1183
  %1201 = vrot.lane.b32.xlu0 %v1185, 96
  %v1202 = vpop.permute.xlu0 %1201
  %1203 = vrot.lane.b32.xlu0 %v1186, 96
  %v1204 = vpop.permute.xlu0 %1203
  %1205 = vrot.lane.b32.xlu0 %v1187, 96
  %v1206 = vpop.permute.xlu0 %1205
  %1207 = vrot.lane.b32.xlu0 %v1188, 96
  %v1208 = vpop.permute.xlu0 %1207
  %1209 = vrot.lane.b32.xlu0 %v1189, 96
  %v1210 = vpop.permute.xlu0 %1209
  %1211 = vrot.lane.b32.xlu0 %v1190, 96
  %v1212 = vpop.permute.xlu0 %1211
  %1213 = vrot.lane.b32.xlu0 %v1191, 96
  %v1214 = vpop.permute.xlu0 %1213
  %1215 = vrot.lane.b32.xlu0 %v1192, 96
  %v1216 = vpop.permute.xlu0 %1215
  %v1225 = vmax.f32 %v1185, %v1202
  %v1226 = vmax.f32 %v1186, %v1204
  %v1227 = vmax.f32 %v1187, %v1206
  %v1228 = vmax.f32 %v1188, %v1208
  %v1229 = vmax.f32 %v1189, %v1210
  %v1230 = vmax.f32 %v1190, %v1212
  %v1231 = vmax.f32 %v1191, %v1214
  %v1232 = vmax.f32 %v1192, %v1216
  %1233 = vmatpush.bf16.msra.mxu0 0
  %1234 = vmatpush.bf16.msra.mxu0 0
  %1235 = vmatpush.bf16.msra.mxu0 0
  %1236 = vmatpush.bf16.msra.mxu0 0
  %1237 = vmatpush.bf16.msra.mxu0 0
  %1238 = vmatpush.bf16.msra.mxu0 0
  %1239 = vmatpush.bf16.msra.mxu0 %v981
  %1240 = vmatpush.bf16.msra.mxu0 %v980
  %1241 = vmatmul.bf16.gmra.mxu0 %v1145
  %v1242 = vpop.f32.mrf.mxu0
  %v1243 = vadd.f32 0.0, %v1242
  %v1244 = vpop.f32.mrf.mxu0
  %v1245 = vadd.f32 0.0, %v1244
  %1246 = vmatmul.bf16.gmra.mxu0 %v1148
  %v1247 = vpop.f32.mrf.mxu0
  %v1248 = vadd.f32 0.0, %v1247
  %v1249 = vpop.f32.mrf.mxu0
  %v1250 = vadd.f32 0.0, %v1249
  %1251 = vmatmul.bf16.gmra.mxu0 %v1151
  %v1252 = vpop.f32.mrf.mxu0
  %v1253 = vadd.f32 0.0, %v1252
  %v1254 = vpop.f32.mrf.mxu0
  %v1255 = vadd.f32 0.0, %v1254
  %1256 = vmatmul.bf16.gmra.mxu0 %v1154
  %v1257 = vpop.f32.mrf.mxu0
  %v1258 = vadd.f32 0.0, %v1257
  %v1259 = vpop.f32.mrf.mxu0
  %v1260 = vadd.f32 0.0, %v1259
  %1261 = vdwg.mxu0
  %1262 = vmatpush.bf16.msra.mxu0 0
  %1263 = vmatpush.bf16.msra.mxu0 0
  %1264 = vmatpush.bf16.msra.mxu0 0
  %1265 = vmatpush.bf16.msra.mxu0 0
  %1266 = vmatpush.bf16.msra.mxu0 0
  %1267 = vmatpush.bf16.msra.mxu0 0
  %1268 = vmatpush.bf16.msra.mxu0 %v1055
  %1269 = vmatpush.bf16.msra.mxu0 %v1054
  %1270 = vmatmul.bf16.gmra.mxu0 %v986
  %v1271 = vpop.f32.mrf.mxu0
  %v1272 = vadd.f32 %v1243, %v1271
  %v1273 = vpop.f32.mrf.mxu0
  %v1274 = vadd.f32 %v1245, %v1273
  %1275 = vmatmul.bf16.gmra.mxu0 %v989
  %v1276 = vpop.f32.mrf.mxu0
  %v1277 = vadd.f32 %v1248, %v1276
  %v1278 = vpop.f32.mrf.mxu0
  %v1279 = vadd.f32 %v1250, %v1278
  %1280 = vmatmul.bf16.gmra.mxu0 %v992
  %v1281 = vpop.f32.mrf.mxu0
  %v1282 = vadd.f32 %v1253, %v1281
  %v1283 = vpop.f32.mrf.mxu0
  %v1284 = vadd.f32 %v1255, %v1283
  %1285 = vmatmul.bf16.gmra.mxu0 %v995
  %v1286 = vpop.f32.mrf.mxu0
  %v1287 = vadd.f32 %v1258, %v1286
  %v1288 = vpop.f32.mrf.mxu0
  %v1289 = vadd.f32 %v1260, %v1288
  %1290 = vdwg.mxu0
  %v1291 = vld [vmem:[#allocation2 + $0x8] sm:$0xf]
  %v1292 = vld [vmem:[#allocation2 + $0xc] sm:$0xf]
  %v1293 = vld [vmem:[#allocation2 + $0x10] sm:$0xf]
  %v1294 = vld [vmem:[#allocation2 + $0x14] sm:$0xf]
  %v1295 = vld [vmem:[#allocation2 + $0x18] sm:$0xf]
  %v1296 = vld [vmem:[#allocation2 + $0x1c] sm:$0xf]
  %v1297 = vld [vmem:[#allocation2 + $0x20] sm:$0xf]
  %v1298 = vld [vmem:[#allocation2 + $0x24] sm:$0xf]
  %v1307 = vunpack.c.l.b16 %v1291
  %v1308 = vunpack.c.l.b16 %v1292
  %v1309 = vunpack.c.l.b16 %v1293
  %v1310 = vunpack.c.l.b16 %v1294
  %v1311 = vunpack.c.l.b16 %v1295
  %v1312 = vunpack.c.l.b16 %v1296
  %v1313 = vunpack.c.l.b16 %v1297
  %v1314 = vunpack.c.l.b16 %v1298
  %v1315 = vpack.c.b16 %v1308, %v1307
  %v1316 = vpack.c.b16 %v1310, %v1309
  %v1317 = vpack.c.b16 %v1312, %v1311
  %v1318 = vpack.c.b16 %v1314, %v1313
  %v1320 = vsel %vm984, %v1315, 0
  %v1323 = vsel %vm984, %v1316, 0
  %v1326 = vsel %vm984, %v1317, 0
  %v1329 = vsel %vm984, %v1318, 0
  %1331 = vmatpush.bf16.msra.mxu0 0
  %1332 = vmatpush.bf16.msra.mxu0 0
  %1333 = vmatpush.bf16.msra.mxu0 0
  %1334 = vmatpush.bf16.msra.mxu0 0
  %1335 = vmatpush.bf16.msra.mxu0 0
  %1336 = vmatpush.bf16.msra.mxu0 0
  %1337 = vmatpush.bf16.msra.mxu0 %v1141
  %1338 = vmatpush.bf16.msra.mxu0 %v1140
  %1339 = vmatmul.bf16.gmra.mxu0 %v1320
  %v1340 = vpop.f32.mrf.mxu0
  %v1341 = vadd.f32 0.0, %v1340
  %v1342 = vpop.f32.mrf.mxu0
  %v1343 = vadd.f32 0.0, %v1342
  %1344 = vmatmul.bf16.gmra.mxu0 %v1323
  %v1345 = vpop.f32.mrf.mxu0
  %v1346 = vadd.f32 0.0, %v1345
  %v1347 = vpop.f32.mrf.mxu0
  %v1348 = vadd.f32 0.0, %v1347
  %1349 = vmatmul.bf16.gmra.mxu0 %v1326
  %v1350 = vpop.f32.mrf.mxu0
  %v1351 = vadd.f32 0.0, %v1350
  %v1352 = vpop.f32.mrf.mxu0
  %v1353 = vadd.f32 0.0, %v1352
  %1354 = vmatmul.bf16.gmra.mxu0 %v1329
  %v1355 = vpop.f32.mrf.mxu0
  %v1356 = vadd.f32 0.0, %v1355
  %v1357 = vpop.f32.mrf.mxu0
  %v1358 = vadd.f32 0.0, %v1357
  %1359 = vdwg.mxu0
  %v1360 = vadd.f32 %v1272, %v1341
  %v1361 = vadd.f32 %v1274, %v1343
  %v1362 = vadd.f32 %v1277, %v1346
  %v1363 = vadd.f32 %v1279, %v1348
  %v1364 = vadd.f32 %v1282, %v1351
  %v1365 = vadd.f32 %v1284, %v1353
  %v1366 = vadd.f32 %v1287, %v1356
  %v1367 = vadd.f32 %v1289, %v1358
  %1376 = vrot.lane.b32.xlu0 %v1360, 96
  %v1377 = vpop.permute.xlu0 %1376
  %1378 = vrot.lane.b32.xlu0 %v1361, 96
  %v1379 = vpop.permute.xlu0 %1378
  %1380 = vrot.lane.b32.xlu0 %v1362, 96
  %v1381 = vpop.permute.xlu0 %1380
  %1382 = vrot.lane.b32.xlu0 %v1363, 96
  %v1383 = vpop.permute.xlu0 %1382
  %1384 = vrot.lane.b32.xlu0 %v1364, 96
  %v1385 = vpop.permute.xlu0 %1384
  %1386 = vrot.lane.b32.xlu0 %v1365, 96
  %v1387 = vpop.permute.xlu0 %1386
  %1388 = vrot.lane.b32.xlu0 %v1366, 96
  %v1389 = vpop.permute.xlu0 %1388
  %1390 = vrot.lane.b32.xlu0 %v1367, 96
  %v1391 = vpop.permute.xlu0 %1390
  %v1400 = vmax.f32 %v1360, %v1377
  %v1401 = vmax.f32 %v1361, %v1379
  %v1402 = vmax.f32 %v1362, %v1381
  %v1403 = vmax.f32 %v1363, %v1383
  %v1404 = vmax.f32 %v1364, %v1385
  %v1405 = vmax.f32 %v1365, %v1387
  %v1406 = vmax.f32 %v1366, %v1389
  %v1407 = vmax.f32 %v1367, %v1391
  %v1408 = vmax.f32 %v1225, %v1400
  %v1409 = vmax.f32 %v1226, %v1401
  %v1410 = vmax.f32 %v1227, %v1402
  %v1411 = vmax.f32 %v1228, %v1403
  %v1412 = vmax.f32 %v1229, %v1404
  %v1413 = vmax.f32 %v1230, %v1405
  %v1414 = vmax.f32 %v1231, %v1406
  %v1415 = vmax.f32 %v1232, %v1407
  %v1416 = vld [vmem:[%s4] sm:$0x1]
  %v1418 = vperm.slane %v1416, 0
  %v1420 = vadd.f32 %v1408, %v1418
  %v1421 = vadd.f32 %v1409, %v1418
  %v1422 = vadd.f32 %v1410, %v1418
  %v1423 = vadd.f32 %v1411, %v1418
  %v1424 = vadd.f32 %v1412, %v1418
  %v1425 = vadd.f32 %v1413, %v1418
  %v1426 = vadd.f32 %v1414, %v1418
  %v1427 = vadd.f32 %v1415, %v1418
  %v1428 = vmax.f32 %v1420, 0.0
  %v1429 = vmax.f32 %v1421, 0.0
  %v1430 = vmax.f32 %v1422, 0.0
  %v1431 = vmax.f32 %v1423, 0.0
  %v1432 = vmax.f32 %v1424, 0.0
  %v1433 = vmax.f32 %v1425, 0.0
  %v1434 = vmax.f32 %v1426, 0.0
  %v1435 = vmax.f32 %v1427, 0.0
  %v1436 = vpack.c.bf16 %v1428, %v1428
  %v1437 = vpack.c.bf16 %v1429, %v1429
  %v1438 = vpack.c.bf16 %v1430, %v1430
  %v1439 = vpack.c.bf16 %v1431, %v1431
  %v1440 = vpack.c.bf16 %v1432, %v1432
  %v1441 = vpack.c.bf16 %v1433, %v1433
  %v1442 = vpack.c.bf16 %v1434, %v1434
  %v1443 = vpack.c.bf16 %v1435, %v1435
  %v1444 = vld [vmem:[%s5] sm:$0xf]
  %v1445 = vld [vmem:[%s5 + $0x4] sm:$0xf]
  %v1446 = vld [vmem:[%s5 + $0x8] sm:$0xf]
  %v1447 = vld [vmem:[%s5 + $0xc] sm:$0xf]
  %v1448 = vld [vmem:[%s5 + $0x10] sm:$0xf]
  %v1449 = vld [vmem:[%s5 + $0x14] sm:$0xf]
  %v1450 = vld [vmem:[%s5 + $0x18] sm:$0xf]
  %v1451 = vld [vmem:[%s5 + $0x1c] sm:$0xf]
  %v1454 = vunpack.c.l.b16 %v1438
  %v1455 = vunpack.c.l.b16 %v1439
  %v1456 = vpack.c.b16 %v1455, %v1454
  %v1461 = vunpack.c.l.b16 %v1448
  %v1462 = vunpack.c.l.b16 %v1449
  %v1463 = vunpack.c.l.b16 %v1450
  %v1464 = vunpack.c.l.b16 %v1451
  %v1465 = vpack.c.b16 %v1462, %v1461
  %v1466 = vpack.c.b16 %v1464, %v1463
  %v1470 = vsel %vm984, %v1456, 0
  %1472 = vmatpush.bf16.msra.mxu0 0
  %1473 = vmatpush.bf16.msra.mxu0 0
  %1474 = vmatpush.bf16.msra.mxu0 0
  %1475 = vmatpush.bf16.msra.mxu0 0
  %1476 = vmatpush.bf16.msra.mxu0 0
  %1477 = vmatpush.bf16.msra.mxu0 0
  %1478 = vmatpush.bf16.msra.mxu0 %v1466
  %1479 = vmatpush.bf16.msra.mxu0 %v1465
  %1480 = vmatmul.bf16.gmra.mxu0 %v1470
  %v1481 = vpop.f32.mrf.mxu0
  %v1482 = vadd.f32 0.0, %v1481
  %v1483 = vpop.f32.mrf.mxu0
  %v1484 = vadd.f32 0.0, %v1483
  %1485 = vdwg.mxu0
  %v1488 = vunpack.c.l.b16 %v1436
  %v1489 = vunpack.c.l.b16 %v1437
  %v1490 = vpack.c.b16 %v1489, %v1488
  %v1495 = vunpack.c.l.b16 %v1444
  %v1496 = vunpack.c.l.b16 %v1445
  %v1497 = vunpack.c.l.b16 %v1446
  %v1498 = vunpack.c.l.b16 %v1447
  %v1499 = vpack.c.b16 %v1496, %v1495
  %v1500 = vpack.c.b16 %v1498, %v1497
  %v1504 = vsel %vm984, %v1490, 0
  %1506 = vmatpush.bf16.msra.mxu0 0
  %1507 = vmatpush.bf16.msra.mxu0 0
  %1508 = vmatpush.bf16.msra.mxu0 0
  %1509 = vmatpush.bf16.msra.mxu0 0
  %1510 = vmatpush.bf16.msra.mxu0 0
  %1511 = vmatpush.bf16.msra.mxu0 0
  %1512 = vmatpush.bf16.msra.mxu0 %v1500
  %1513 = vmatpush.bf16.msra.mxu0 %v1499
  %1514 = vmatmul.bf16.gmra.mxu0 %v1504
  %v1515 = vpop.f32.mrf.mxu0
  %v1516 = vadd.f32 %v1482, %v1515
  %v1517 = vpop.f32.mrf.mxu0
  %v1518 = vadd.f32 %v1484, %v1517
  %1519 = vdwg.mxu0
  %v1520 = vld [vmem:[%s5 + $0x20] sm:$0xf]
  %v1521 = vld [vmem:[%s5 + $0x24] sm:$0xf]
  %v1522 = vld [vmem:[%s5 + $0x28] sm:$0xf]
  %v1523 = vld [vmem:[%s5 + $0x2c] sm:$0xf]
  %v1526 = vunpack.c.l.b16 %v1440
  %v1527 = vunpack.c.l.b16 %v1441
  %v1528 = vpack.c.b16 %v1527, %v1526
  %v1533 = vunpack.c.l.b16 %v1520
  %v1534 = vunpack.c.l.b16 %v1521
  %v1535 = vunpack.c.l.b16 %v1522
  %v1536 = vunpack.c.l.b16 %v1523
  %v1537 = vpack.c.b16 %v1534, %v1533
  %v1538 = vpack.c.b16 %v1536, %v1535
  %v1542 = vsel %vm984, %v1528, 0
  %1544 = vmatpush.bf16.msra.mxu0 0
  %1545 = vmatpush.bf16.msra.mxu0 0
  %1546 = vmatpush.bf16.msra.mxu0 0
  %1547 = vmatpush.bf16.msra.mxu0 0
  %1548 = vmatpush.bf16.msra.mxu0 0
  %1549 = vmatpush.bf16.msra.mxu0 0
  %1550 = vmatpush.bf16.msra.mxu0 %v1538
  %1551 = vmatpush.bf16.msra.mxu0 %v1537
  %1552 = vmatmul.bf16.gmra.mxu0 %v1542
  %v1553 = vpop.f32.mrf.mxu0
  %v1554 = vadd.f32 0.0, %v1553
  %v1555 = vpop.f32.mrf.mxu0
  %v1556 = vadd.f32 0.0, %v1555
  %1557 = vdwg.mxu0
  %v1558 = vadd.f32 %v1516, %v1554
  %v1559 = vadd.f32 %v1518, %v1556
  %v1560 = vld [vmem:[%s5 + $0x30] sm:$0xf]
  %v1561 = vld [vmem:[%s5 + $0x34] sm:$0xf]
  %v1562 = vld [vmem:[%s5 + $0x38] sm:$0xf]
  %v1563 = vld [vmem:[%s5 + $0x3c] sm:$0xf]
  %v1566 = vunpack.c.l.b16 %v1442
  %v1567 = vunpack.c.l.b16 %v1443
  %v1568 = vpack.c.b16 %v1567, %v1566
  %v1573 = vunpack.c.l.b16 %v1560
  %v1574 = vunpack.c.l.b16 %v1561
  %v1575 = vunpack.c.l.b16 %v1562
  %v1576 = vunpack.c.l.b16 %v1563
  %v1577 = vpack.c.b16 %v1574, %v1573
  %v1578 = vpack.c.b16 %v1576, %v1575
  %v1582 = vsel %vm984, %v1568, 0
  %1584 = vmatpush.bf16.msra.mxu0 0
  %1585 = vmatpush.bf16.msra.mxu0 0
  %1586 = vmatpush.bf16.msra.mxu0 0
  %1587 = vmatpush.bf16.msra.mxu0 0
  %1588 = vmatpush.bf16.msra.mxu0 0
  %1589 = vmatpush.bf16.msra.mxu0 0
  %1590 = vmatpush.bf16.msra.mxu0 %v1578
  %1591 = vmatpush.bf16.msra.mxu0 %v1577
  %1592 = vmatmul.bf16.gmra.mxu0 %v1582
  %v1593 = vpop.f32.mrf.mxu0
  %v1594 = vadd.f32 0.0, %v1593
  %v1595 = vpop.f32.mrf.mxu0
  %v1596 = vadd.f32 0.0, %v1595
  %1597 = vdwg.mxu0
  %v1598 = vadd.f32 %v1558, %v1594
  %v1599 = vadd.f32 %v1559, %v1596
  %v1600 = vld [vmem:[%s6] sm:$0x1]
  %v1602 = vperm.slane %v1600, 0
  %v1604 = vadd.f32 %v1598, %v1602
  %v1605 = vadd.f32 %v1599, %v1602
  %v1606 = vmax.f32 %v1604, 0.0
  %v1607 = vmax.f32 %v1605, 0.0
  %v1608 = vpack.c.bf16 %v1607, %v1606
  %v1609 = vld [vmem:[%s7] sm:$0xf]
  %v1610 = vld [vmem:[%s7 + $0x4] sm:$0xf]
  %v1611 = vld [vmem:[%s7 + $0x8] sm:$0xf]
  %v1612 = vld [vmem:[%s7 + $0xc] sm:$0xf]
  %v1613 = vld [vmem:[%s8] sm:$0x1]
  %v1615 = vperm.slane %v1613, 0
  %v1621 = vunpack.c.l.b16 %v1609
  %v1622 = vunpack.c.l.b16 %v1610
  %v1623 = vunpack.c.l.b16 %v1611
  %v1624 = vunpack.c.l.b16 %v1612
  %v1625 = vpack.c.b16 %v1622, %v1621
  %v1626 = vpack.c.b16 %v1624, %v1623
  %v1630 = vsel %vm984, %v1608, 0
  %1632 = vmatpush.bf16.msra.mxu0 0
  %1633 = vmatpush.bf16.msra.mxu0 0
  %1634 = vmatpush.bf16.msra.mxu0 0
  %1635 = vmatpush.bf16.msra.mxu0 0
  %1636 = vmatpush.bf16.msra.mxu0 0
  %1637 = vmatpush.bf16.msra.mxu0 0
  %1638 = vmatpush.bf16.msra.mxu0 %v1626
  %1639 = vmatpush.bf16.msra.mxu0 %v1625
  %1640 = vmatmul.bf16.gmra.mxu0 %v1630
  %v1641 = vpop.f32.mrf.mxu0
  %v1642 = vadd.f32 %v1615, %v1641
  %v1643 = vpop.f32.mrf.mxu0
  %v1644 = vadd.f32 %v1615, %v1643
  %1645 = vdwg.mxu0
  %1646 = vst [vmem:[%s9] sm:$0xff] %v1642
  %1647 = vst [vmem:[%s9 + $0x8] sm:$0xff] %v1644
  // Predicated region
  $region38: #{forward.1} parent=0 // pred_check
    _
  $region39: #{forward.1} parent=0 // pred_check_branch
    %1649 = sbr.rel (0) target = $region41
  $region40: #{forward.1} parent=0 // pred_region
    _
  $region41: #{forward.1} parent=0 // pred_fallthru
    _
  // Predicated region
  $region42: #{forward.1} parent=0 // pred_check
    _
  $region43: #{forward.1} parent=0 // pred_check_branch
    %1651 = sbr.rel (0) target = $region45
  $region44: #{forward.1} parent=0 // pred_region
    _
  $region45: #{forward.1} parent=0 // pred_fallthru
    _

</llo_original>
